<compile_context>
chip_gen: v7x
topology: tpu7x:2x2x1
jax: 0.10.0
libtpu: 0.0.40
codegen_flags: <defaults>
</compile_context>

<pallas_src>
import functools

import jax
import jax.numpy as jnp
from jax import lax
from jax.experimental import pallas as pl
from jax.experimental.pallas import tpu as pltpu


def _largest_divisor_leq(x, cap):
    for d in range(min(x, cap), 0, -1):
        if x % d == 0:
            return d
    return 1


def _pick_th(n, cb, h, w, ho, wo, stride, itemsize):
    """Largest H-tile (divisor of H) whose live VMEM footprint fits the budget."""
    budget = 30 * 1024 * 1024

    def footprint(th):
        nh = h // th
        tho = ho if nh == 1 else th // stride
        fp = 2 * n * th * w * cb * itemsize                      # main input x2 (double buffer)
        fp += 4 * n * w * cb * itemsize                          # 2 halo rows x2
        fp += 2 * n * tho * wo * cb * itemsize * (2 if stride == 2 else 1)  # output x2
        fp += n * (th + 2) * w * cb * 4                          # row-sum scratch
        if stride == 2:
            fp += n * tho * w * cb * 4                           # strided H-sum scratch
        return fp

    cands = [d for d in range(h, 0, -1)
             if h % d == 0 and (stride == 1 or d % 2 == 0 or d == h)]
    feasible = [d for d in cands if footprint(d) <= budget]
    if not feasible:
        return cands[-1]                     # best effort: smallest legal tile
    sub = [d for d in feasible if d < h]
    # Prefer >= 2 H tiles so the pipeline (and this test) actually exercises
    # halo fetches + cross-tile stat accumulation.
    if sub and h >= 8:
        return max(sub)
    return feasible[0]


def _avgpool_bn_kernel(x_ref, top_ref, bot_ref, out_ref,
                       rs_ref, sum_ref, sq_ref, hs_ref=None, *,
                       stride, scaled_eps, inv_total, right_scale,
                       bot_used, dup):
    """One H-tile of AvgPool(3,stride,pad=1,count_include_pad=False) + fused BN.

    x_ref:   (N, TH, W, CB) unpadded NHWC tile
    top/bot: (N, 1,  W, CB) halo rows (clamped; overridden at image borders)
    out_ref: (N, THo, Wo, CB)  or (N, 2, THo, Wo, CB) when dup (stride==2)
    rs_ref:  (N, TH+2, W, CB) f32 row sums with H halo rows
    sum/sq:  (1, 1, 1, CB) f32 accumulators -> reused as mean / inv_std
    """
    n, th, w, cb = x_ref.shape
    tho = out_ref.shape[-3]
    wo = out_ref.shape[-2]

    p = pl.program_id(1)      # 0: stats pass, 1: normalize/store pass
    hi = pl.program_id(2)
    nh = pl.num_programs(2)

    def store_rowsum(r0, r1, xv):
        # 3-tap W box sum of xv -> rs_ref rows [r0:r1].  count_include_pad
        # correction is folded into the two border columns only (the uniform
        # interior scale cancels inside the BatchNorm normalization).
        rs_ref[:, r0:r1, 1:w - 1, :] = (xv[:, :, 0:w - 2, :]
                                        + xv[:, :, 1:w - 1, :]
                                        + xv[:, :, 2:w, :])
        rs_ref[:, r0:r1, 0:1, :] = 1.5 * (xv[:, :, 0:1, :] + xv[:, :, 1:2, :])
        rs_ref[:, r0:r1, w - 1:w, :] = right_scale * (
            xv[:, :, w - 2:w - 1, :] + xv[:, :, w - 1:w, :])

    # Main tile row sums -> rs rows 1..TH (single f32 cast of the block).
    store_rowsum(1, th + 1, x_ref[...].astype(jnp.float32))

    # Top halo row (rs row 0): previous tile's last row, or the border
    # correction 0.5*(rs1 + rs2) at the image top (clipped window, count 2).
    @pl.when(hi == 0)
    def _():
        rs_ref[:, 0:1, :, :] = 0.5 * (rs_ref[:, 1:2, :, :] + rs_ref[:, 2:3, :, :])

    @pl.when(hi > 0)
    def _():
        store_rowsum(0, 1, top_ref[...].astype(jnp.float32))

    # Bottom halo row (rs row TH+1): only materialized when it is consumed.
    if bot_used:
        @pl.when(hi == nh - 1)
        def _():
            rs_ref[:, th + 1:th + 2, :, :] = 0.5 * (
                rs_ref[:, th - 1:th, :, :] + rs_ref[:, th:th + 1, :, :])

        @pl.when(hi < nh - 1)
        def _():
            store_rowsum(th + 1, th + 2, bot_ref[...].astype(jnp.float32))

    # 3-tap H box sum: plain / strided leading-dim slices of the row sums.
    if stride == 1:
        box = (rs_ref[:, 0:th, :, :] + rs_ref[:, 1:th + 1, :, :]
               + rs_ref[:, 2:th + 2, :, :])                      # (N, TH, W, CB)
    else:
        hs_ref[...] = (rs_ref[:, pl.ds(0, tho, 2), :, :]
                       + rs_ref[:, pl.ds(1, tho, 2), :, :]
                       + rs_ref[:, pl.ds(2, tho, 2), :, :])      # (N, THo, W, CB)
        box = hs_ref[:, :, pl.ds(0, wo, 2), :]                   # (N, THo, Wo, CB)

    # ---- phase 0: accumulate per-channel sum / sum-of-squares ----------------
    @pl.when(jnp.logical_and(p == 0, hi == 0))
    def _():
        sum_ref[...] = jnp.zeros_like(sum_ref)
        sq_ref[...] = jnp.zeros_like(sq_ref)

    @pl.when(p == 0)
    def _():
        sum_ref[...] += jnp.sum(box, axis=(0, 1, 2), keepdims=True)
        sq_ref[...] += jnp.sum(box * box, axis=(0, 1, 2), keepdims=True)

    @pl.when(jnp.logical_and(p == 0, hi == nh - 1))
    def _():
        mean = sum_ref[...] * inv_total
        var = jnp.maximum(sq_ref[...] * inv_total - mean * mean, 0.0)
        sum_ref[...] = mean                        # reuse scratch as mean
        sq_ref[...] = lax.rsqrt(var + scaled_eps)  # reuse scratch as inv_std

    # ---- phase 1: normalize and store ----------------------------------------
    @pl.when(p == 1)
    def _():
        y = ((box - sum_ref[...]) * sq_ref[...]).astype(out_ref.dtype)
        if dup:
            # stride == 2: torch.cat((out, out), dim=1) folded into the kernel.
            out_ref[:, 0, :, :, :] = y
            out_ref[:, 1, :, :, :] = y
        else:
            out_ref[...] = y


def avgpool2d_forward(x, *, stride=1, affine=True, eps=1e-5):
    """Forward pass of the PyTorch `avgpool2d` NAS module (NCHW in / NCHW out)."""
    assert stride in (1, 2)
    n, c, h, w = x.shape
    assert h >= 3 and w >= 3
    ho = (h - 1) // stride + 1
    wo = (w - 1) // stride + 1

    # PyTorch default BN init is weight=1 / bias=0, so `affine` does not change
    # the forward output; no gamma/beta inputs are plumbed into the kernel.
    del affine
    # TODO(synk): BatchNorm running_mean/running_var buffer updates are not
    # modeled (they do not affect the training-mode forward output).

    # Channels-last so channels map to the 128-wide lane axis inside the kernel.
    # TODO(synk): in a channels-last pipeline this transpose (and the one on the
    # output) is a no-op; it remains here only because the module contract is
    # NCHW and a reliable in-kernel 4D relayout is not available.
    x_nhwc = jnp.transpose(x, (0, 2, 3, 1))

    itemsize = jnp.dtype(x.dtype).itemsize
    cb = _largest_divisor_leq(c, 128)
    th = _pick_th(n, cb, h, w, ho, wo, stride, itemsize)
    nh = h // th
    tho = ho if nh == 1 else th // stride
    assert tho * nh == ho
    grid_c = c // cb

    # Border handling (count_include_pad=False): the first row/column window is
    # always clipped; the last one only when the window runs past the edge.
    right_scale = 1.5 if ((wo - 1) * stride + 1 >= w) else 1.0
    bot_used = (stride == 1) or (th % 2 == 1)
    dup = (stride == 2)
    inv_total = 1.0 / float(n * ho * wo)
    scaled_eps = float(eps) * 81.0   # box sums = 9 * pooled  ->  var scales by 81

    kernel = functools.partial(
        _avgpool_bn_kernel, stride=stride, scaled_eps=scaled_eps,
        inv_total=inv_total, right_scale=right_scale, bot_used=bot_used,
        dup=dup)

    in_specs = [
        pl.BlockSpec((n, th, w, cb), lambda ci, p, hi: (0, hi, 0, ci)),
        # 1-row halos (block size 1 on H => block index == row index, clamped).
        pl.BlockSpec((n, 1, w, cb),
                     lambda ci, p, hi: (0, jnp.maximum(hi * th - 1, 0), 0, ci)),
        pl.BlockSpec((n, 1, w, cb),
                     lambda ci, p, hi: (0, jnp.minimum(hi * th + th, h - 1), 0, ci)),
    ]

    if dup:
        out_shape = jax.ShapeDtypeStruct((n, 2, ho, wo, c), x.dtype)
        # Phase 0 parks the out index at this c-block's first tile (no garbage
        # writeback); phase 1 walks the H tiles and writes real data.
        out_specs = pl.BlockSpec((n, 2, tho, wo, cb),
                                 lambda ci, p, hi: (0, 0, hi * p, 0, ci))
    else:
        out_shape = jax.ShapeDtypeStruct((n, ho, wo, c), x.dtype)
        out_specs = pl.BlockSpec((n, tho, wo, cb),
                                 lambda ci, p, hi: (0, hi * p, 0, ci))

    scratch_shapes = [
        pltpu.VMEM((n, th + 2, w, cb), jnp.float32),   # halo'd row sums
        pltpu.VMEM((1, 1, 1, cb), jnp.float32),        # per-channel sum -> mean
        pltpu.VMEM((1, 1, 1, cb), jnp.float32),        # per-channel sumsq -> inv_std
    ]
    if stride == 2:
        scratch_shapes.append(pltpu.VMEM((n, tho, w, cb), jnp.float32))

    out = pl.pallas_call(
        kernel,
        out_shape=out_shape,
        grid=(grid_c, 2, nh),
        in_specs=in_specs,
        out_specs=out_specs,
        scratch_shapes=scratch_shapes,
        compiler_params=pltpu.CompilerParams(
            dimension_semantics=("parallel", "arbitrary", "arbitrary"),
            vmem_limit_bytes=48 * 1024 * 1024),
    )(x_nhwc, x_nhwc, x_nhwc)

    if dup:
        # (N, 2, Ho, Wo, C) -> (N, 2, C, Ho, Wo) -> (N, 2C, Ho, Wo): exactly
        # torch.cat((out, out), dim=1) in NCHW, no separate concat pass.
        out = jnp.transpose(out, (0, 1, 4, 2, 3)).reshape(n, 2 * c, ho, wo)
    else:
        out = jnp.transpose(out, (0, 3, 1, 2))
    return out


def _reference(x, *, stride=1, eps=1e-5):
    """Pure-JAX reference of the same forward pass (NCHW)."""
    n, c, h, w = x.shape
    ho = (h - 1) // stride + 1
    wo = (w - 1) // stride + 1
    xp = jnp.pad(x, ((0, 0), (0, 0), (1, 1), (1, 1)))
    mp = jnp.pad(jnp.ones((h, w), jnp.float32), ((1, 1), (1, 1)))
    acc = jnp.zeros((n, c, ho, wo), jnp.float32)
    cnt = jnp.zeros((ho, wo), jnp.float32)
    for di in range(3):
        r = slice(di, di + (ho - 1) * stride + 1, stride)
        for dj in range(3):
            cc = slice(dj, dj + (wo - 1) * stride + 1, stride)
            acc = acc + xp[:, :, r, cc]
            cnt = cnt + mp[r, cc]
    pooled = acc / cnt[None, None]
    if stride == 2:
        pooled = jnp.concatenate([pooled, pooled], axis=1)
    mean = pooled.mean(axis=(0, 2, 3), keepdims=True)
    var = ((pooled - mean) ** 2).mean(axis=(0, 2, 3), keepdims=True)
    return (pooled - mean) / jnp.sqrt(var + eps)


if __name__ == "__main__":
    key = jax.random.PRNGKey(0)
    N, C, H, W = 2, 4, 16, 16
    x = jax.random.normal(key, (N, C, H, W), dtype=jnp.float32)

    # stride == 1 path (multi H-tile: exercises halos + cross-tile BN stats)
    out1 = jax.block_until_ready(avgpool2d_forward(x, stride=1, affine=True))
    ref1 = _reference(x, stride=1)
    assert out1.shape == (N, C, H, W), out1.shape
    err1 = float(jnp.max(jnp.abs(out1 - ref1)))
    assert err1 < 3e-4, err1

    # stride == 2 path (downsampling + in-kernel channel duplication)
    out2 = jax.block_until_ready(avgpool2d_forward(x, stride=2, affine=True))
    ref2 = _reference(x, stride=2)
    assert out2.shape == (N, 2 * C, H // 2, W // 2), out2.shape
    err2 = float(jnp.max(jnp.abs(out2 - ref2)))
    assert err2 < 3e-4, err2

    print("KERNEL_OK")
</pallas_src>

<mosaic_0001>
module attributes {stable_mosaic.version = 11 : i64} {
  func.func @_avgpool_bn_kernel(%arg0: i32, %arg1: i32, %arg2: i32, %arg3: memref<2x8x16x4xf32, #tpu.memory_space<vmem>>, %arg4: memref<2x1x16x4xf32, #tpu.memory_space<vmem>>, %arg5: memref<2x1x16x4xf32, #tpu.memory_space<vmem>>, %arg6: memref<2x8x16x4xf32, #tpu.memory_space<vmem>>, %arg7: memref<2x10x16x4xf32, #tpu.memory_space<vmem>>, %arg8: memref<1x1x1x4xf32, #tpu.memory_space<vmem>>, %arg9: memref<1x1x1x4xf32, #tpu.memory_space<vmem>>) attributes {dimension_semantics = [#tpu.dimension_semantics<parallel>, #tpu.dimension_semantics<arbitrary>, #tpu.dimension_semantics<arbitrary>], iteration_bounds = array<i64: 1, 2, 2>, scalar_prefetch = 0 : i64, scratch_operands = 3 : i64, tpu.core_type = #tpu.core_type<tc>, window_params = [{transform_indices = @transform_0, window_bounds = array<i64: 2, 8, 16, 4>}, {transform_indices = @transform_1, window_bounds = array<i64: 2, 1, 16, 4>}, {transform_indices = @transform_2, window_bounds = array<i64: 2, 1, 16, 4>}, {transform_indices = @transform_3, window_bounds = array<i64: 2, 8, 16, 4>}]} {
    %c0 = arith.constant 0 : index
    %c0_0 = arith.constant 0 : index
    %c0_1 = arith.constant 0 : index
    %c0_2 = arith.constant 0 : index
    %0 = vector.load %arg3[%c0, %c0_0, %c0_1, %c0_2] : memref<2x8x16x4xf32, #tpu.memory_space<vmem>>, vector<2x8x16x4xf32>
    %1 = vector.extract_strided_slice %0 {offsets = [0, 0, 0, 0], sizes = [2, 8, 14, 4], strides = [1, 1, 1, 1]} : vector<2x8x16x4xf32> to vector<2x8x14x4xf32>
    %2 = vector.extract_strided_slice %0 {offsets = [0, 0, 1, 0], sizes = [2, 8, 14, 4], strides = [1, 1, 1, 1]} : vector<2x8x16x4xf32> to vector<2x8x14x4xf32>
    %3 = arith.addf %1, %2 : vector<2x8x14x4xf32>
    %4 = vector.extract_strided_slice %0 {offsets = [0, 0, 2, 0], sizes = [2, 8, 14, 4], strides = [1, 1, 1, 1]} : vector<2x8x16x4xf32> to vector<2x8x14x4xf32>
    %5 = arith.addf %3, %4 : vector<2x8x14x4xf32>
    %c0_3 = arith.constant 0 : index
    %c1 = arith.constant 1 : index
    %c1_4 = arith.constant 1 : index
    %c0_5 = arith.constant 0 : index
    %6 = vector.load %arg7[%c0_3, %c1, %c1_4, %c0_5] : memref<2x10x16x4xf32, #tpu.memory_space<vmem>>, vector<2x8x14x4xf32>
    tpu.vector_store %arg7[%c0_3, %c1, %c1_4, %c0_5], %5 {strides = array<i32>} : memref<2x10x16x4xf32, #tpu.memory_space<vmem>>, vector<2x8x14x4xf32>,
    %7 = vector.extract_strided_slice %0 {offsets = [0, 0, 0, 0], sizes = [2, 8, 1, 4], strides = [1, 1, 1, 1]} : vector<2x8x16x4xf32> to vector<2x8x1x4xf32>
    %8 = vector.extract_strided_slice %0 {offsets = [0, 0, 1, 0], sizes = [2, 8, 1, 4], strides = [1, 1, 1, 1]} : vector<2x8x16x4xf32> to vector<2x8x1x4xf32>
    %9 = arith.addf %7, %8 : vector<2x8x1x4xf32>
    %cst = arith.constant 1.500000e+00 : f32
    %10 = vector.broadcast %cst : f32 to vector<2x8x1x4xf32>
    %11 = arith.mulf %10, %9 : vector<2x8x1x4xf32>
    %c0_6 = arith.constant 0 : index
    %c1_7 = arith.constant 1 : index
    %c0_8 = arith.constant 0 : index
    %c0_9 = arith.constant 0 : index
    %12 = vector.load %arg7[%c0_6, %c1_7, %c0_8, %c0_9] : memref<2x10x16x4xf32, #tpu.memory_space<vmem>>, vector<2x8x1x4xf32>
    tpu.vector_store %arg7[%c0_6, %c1_7, %c0_8, %c0_9], %11 {strides = array<i32>} : memref<2x10x16x4xf32, #tpu.memory_space<vmem>>, vector<2x8x1x4xf32>,
    %13 = vector.extract_strided_slice %0 {offsets = [0, 0, 14, 0], sizes = [2, 8, 1, 4], strides = [1, 1, 1, 1]} : vector<2x8x16x4xf32> to vector<2x8x1x4xf32>
    %14 = vector.extract_strided_slice %0 {offsets = [0, 0, 15, 0], sizes = [2, 8, 1, 4], strides = [1, 1, 1, 1]} : vector<2x8x16x4xf32> to vector<2x8x1x4xf32>
    %15 = arith.addf %13, %14 : vector<2x8x1x4xf32>
    %cst_10 = arith.constant 1.500000e+00 : f32
    %16 = vector.broadcast %cst_10 : f32 to vector<2x8x1x4xf32>
    %17 = arith.mulf %16, %15 : vector<2x8x1x4xf32>
    %c0_11 = arith.constant 0 : index
    %c1_12 = arith.constant 1 : index
    %c15 = arith.constant 15 : index
    %c0_13 = arith.constant 0 : index
    %18 = vector.load %arg7[%c0_11, %c1_12, %c15, %c0_13] : memref<2x10x16x4xf32, #tpu.memory_space<vmem>>, vector<2x8x1x4xf32>
    tpu.vector_store %arg7[%c0_11, %c1_12, %c15, %c0_13], %17 {strides = array<i32>} : memref<2x10x16x4xf32, #tpu.memory_space<vmem>>, vector<2x8x1x4xf32>,
    %c0_i32 = arith.constant 0 : i32
    %19 = arith.cmpi eq, %arg2, %c0_i32 : i32
    %20 = arith.extui %19 : i1 to i32
    %c0_i32_14 = arith.constant 0 : i32
    %21 = arith.cmpi ne, %20, %c0_i32_14 : i32
    scf.if %21 {
      %c0_41 = arith.constant 0 : index
      %c1_42 = arith.constant 1 : index
      %c0_43 = arith.constant 0 : index
      %c0_44 = arith.constant 0 : index
      %52 = vector.load %arg7[%c0_41, %c1_42, %c0_43, %c0_44] : memref<2x10x16x4xf32, #tpu.memory_space<vmem>>, vector<2x1x16x4xf32>
      %c0_45 = arith.constant 0 : index
      %c2_46 = arith.constant 2 : index
      %c0_47 = arith.constant 0 : index
      %c0_48 = arith.constant 0 : index
      %53 = vector.load %arg7[%c0_45, %c2_46, %c0_47, %c0_48] : memref<2x10x16x4xf32, #tpu.memory_space<vmem>>, vector<2x1x16x4xf32>
      %54 = arith.addf %52, %53 : vector<2x1x16x4xf32>
      %cst_49 = arith.constant 5.000000e-01 : f32
      %55 = vector.broadcast %cst_49 : f32 to vector<2x1x16x4xf32>
      %56 = arith.mulf %55, %54 : vector<2x1x16x4xf32>
      %c0_50 = arith.constant 0 : index
      %c0_51 = arith.constant 0 : index
      %c0_52 = arith.constant 0 : index
      %c0_53 = arith.constant 0 : index
      %57 = vector.load %arg7[%c0_50, %c0_51, %c0_52, %c0_53] : memref<2x10x16x4xf32, #tpu.memory_space<vmem>>, vector<2x1x16x4xf32>
      tpu.vector_store %arg7[%c0_50, %c0_51, %c0_52, %c0_53], %56 {strides = array<i32>} : memref<2x10x16x4xf32, #tpu.memory_space<vmem>>, vector<2x1x16x4xf32>,
    } else {
    }
    %c0_i32_15 = arith.constant 0 : i32
    %22 = arith.cmpi sgt, %arg2, %c0_i32_15 : i32
    %23 = arith.extui %22 : i1 to i32
    %c0_i32_16 = arith.constant 0 : i32
    %24 = arith.cmpi ne, %23, %c0_i32_16 : i32
    scf.if %24 {
      %c0_41 = arith.constant 0 : index
      %c0_42 = arith.constant 0 : index
      %c0_43 = arith.constant 0 : index
      %c0_44 = arith.constant 0 : index
      %52 = vector.load %arg4[%c0_41, %c0_42, %c0_43, %c0_44] : memref<2x1x16x4xf32, #tpu.memory_space<vmem>>, vector<2x1x16x4xf32>
      %53 = vector.extract_strided_slice %52 {offsets = [0, 0, 0, 0], sizes = [2, 1, 14, 4], strides = [1, 1, 1, 1]} : vector<2x1x16x4xf32> to vector<2x1x14x4xf32>
      %54 = vector.extract_strided_slice %52 {offsets = [0, 0, 1, 0], sizes = [2, 1, 14, 4], strides = [1, 1, 1, 1]} : vector<2x1x16x4xf32> to vector<2x1x14x4xf32>
      %55 = arith.addf %53, %54 : vector<2x1x14x4xf32>
      %56 = vector.extract_strided_slice %52 {offsets = [0, 0, 2, 0], sizes = [2, 1, 14, 4], strides = [1, 1, 1, 1]} : vector<2x1x16x4xf32> to vector<2x1x14x4xf32>
      %57 = arith.addf %55, %56 : vector<2x1x14x4xf32>
      %c0_45 = arith.constant 0 : index
      %c0_46 = arith.constant 0 : index
      %c1_47 = arith.constant 1 : index
      %c0_48 = arith.constant 0 : index
      %58 = vector.load %arg7[%c0_45, %c0_46, %c1_47, %c0_48] : memref<2x10x16x4xf32, #tpu.memory_space<vmem>>, vector<2x1x14x4xf32>
      tpu.vector_store %arg7[%c0_45, %c0_46, %c1_47, %c0_48], %57 {strides = array<i32>} : memref<2x10x16x4xf32, #tpu.memory_space<vmem>>, vector<2x1x14x4xf32>,
      %59 = vector.extract_strided_slice %52 {offsets = [0, 0, 0, 0], sizes = [2, 1, 1, 4], strides = [1, 1, 1, 1]} : vector<2x1x16x4xf32> to vector<2x1x1x4xf32>
      %60 = vector.extract_strided_slice %52 {offsets = [0, 0, 1, 0], sizes = [2, 1, 1, 4], strides = [1, 1, 1, 1]} : vector<2x1x16x4xf32> to vector<2x1x1x4xf32>
      %61 = arith.addf %59, %60 : vector<2x1x1x4xf32>
      %cst_49 = arith.constant 1.500000e+00 : f32
      %62 = vector.broadcast %cst_49 : f32 to vector<2x1x1x4xf32>
      %63 = arith.mulf %62, %61 : vector<2x1x1x4xf32>
      %c0_50 = arith.constant 0 : index
      %c0_51 = arith.constant 0 : index
      %c0_52 = arith.constant 0 : index
      %c0_53 = arith.constant 0 : index
      %64 = vector.load %arg7[%c0_50, %c0_51, %c0_52, %c0_53] : memref<2x10x16x4xf32, #tpu.memory_space<vmem>>, vector<2x1x1x4xf32>
      tpu.vector_store %arg7[%c0_50, %c0_51, %c0_52, %c0_53], %63 {strides = array<i32>} : memref<2x10x16x4xf32, #tpu.memory_space<vmem>>, vector<2x1x1x4xf32>,
      %65 = vector.extract_strided_slice %52 {offsets = [0, 0, 14, 0], sizes = [2, 1, 1, 4], strides = [1, 1, 1, 1]} : vector<2x1x16x4xf32> to vector<2x1x1x4xf32>
      %66 = vector.extract_strided_slice %52 {offsets = [0, 0, 15, 0], sizes = [2, 1, 1, 4], strides = [1, 1, 1, 1]} : vector<2x1x16x4xf32> to vector<2x1x1x4xf32>
      %67 = arith.addf %65, %66 : vector<2x1x1x4xf32>
      %cst_54 = arith.constant 1.500000e+00 : f32
      %68 = vector.broadcast %cst_54 : f32 to vector<2x1x1x4xf32>
      %69 = arith.mulf %68, %67 : vector<2x1x1x4xf32>
      %c0_55 = arith.constant 0 : index
      %c0_56 = arith.constant 0 : index
      %c15_57 = arith.constant 15 : index
      %c0_58 = arith.constant 0 : index
      %70 = vector.load %arg7[%c0_55, %c0_56, %c15_57, %c0_58] : memref<2x10x16x4xf32, #tpu.memory_space<vmem>>, vector<2x1x1x4xf32>
      tpu.vector_store %arg7[%c0_55, %c0_56, %c15_57, %c0_58], %69 {strides = array<i32>} : memref<2x10x16x4xf32, #tpu.memory_space<vmem>>, vector<2x1x1x4xf32>,
    } else {
    }
    %c1_i32 = arith.constant 1 : i32
    %25 = arith.cmpi eq, %arg2, %c1_i32 : i32
    %26 = arith.extui %25 : i1 to i32
    %c0_i32_17 = arith.constant 0 : i32
    %27 = arith.cmpi ne, %26, %c0_i32_17 : i32
    scf.if %27 {
      %c0_41 = arith.constant 0 : index
      %c7 = arith.constant 7 : index
      %c0_42 = arith.constant 0 : index
      %c0_43 = arith.constant 0 : index
      %52 = vector.load %arg7[%c0_41, %c7, %c0_42, %c0_43] : memref<2x10x16x4xf32, #tpu.memory_space<vmem>>, vector<2x1x16x4xf32>
      %c0_44 = arith.constant 0 : index
      %c8 = arith.constant 8 : index
      %c0_45 = arith.constant 0 : index
      %c0_46 = arith.constant 0 : index
      %53 = vector.load %arg7[%c0_44, %c8, %c0_45, %c0_46] : memref<2x10x16x4xf32, #tpu.memory_space<vmem>>, vector<2x1x16x4xf32>
      %54 = arith.addf %52, %53 : vector<2x1x16x4xf32>
      %cst_47 = arith.constant 5.000000e-01 : f32
      %55 = vector.broadcast %cst_47 : f32 to vector<2x1x16x4xf32>
      %56 = arith.mulf %55, %54 : vector<2x1x16x4xf32>
      %c0_48 = arith.constant 0 : index
      %c9 = arith.constant 9 : index
      %c0_49 = arith.constant 0 : index
      %c0_50 = arith.constant 0 : index
      %57 = vector.load %arg7[%c0_48, %c9, %c0_49, %c0_50] : memref<2x10x16x4xf32, #tpu.memory_space<vmem>>, vector<2x1x16x4xf32>
      tpu.vector_store %arg7[%c0_48, %c9, %c0_49, %c0_50], %56 {strides = array<i32>} : memref<2x10x16x4xf32, #tpu.memory_space<vmem>>, vector<2x1x16x4xf32>,
    } else {
    }
    %c1_i32_18 = arith.constant 1 : i32
    %28 = arith.cmpi slt, %arg2, %c1_i32_18 : i32
    %29 = arith.extui %28 : i1 to i32
    %c0_i32_19 = arith.constant 0 : i32
    %30 = arith.cmpi ne, %29, %c0_i32_19 : i32
    scf.if %30 {
      %c0_41 = arith.constant 0 : index
      %c0_42 = arith.constant 0 : index
      %c0_43 = arith.constant 0 : index
      %c0_44 = arith.constant 0 : index
      %52 = vector.load %arg5[%c0_41, %c0_42, %c0_43, %c0_44] : memref<2x1x16x4xf32, #tpu.memory_space<vmem>>, vector<2x1x16x4xf32>
      %53 = vector.extract_strided_slice %52 {offsets = [0, 0, 0, 0], sizes = [2, 1, 14, 4], strides = [1, 1, 1, 1]} : vector<2x1x16x4xf32> to vector<2x1x14x4xf32>
      %54 = vector.extract_strided_slice %52 {offsets = [0, 0, 1, 0], sizes = [2, 1, 14, 4], strides = [1, 1, 1, 1]} : vector<2x1x16x4xf32> to vector<2x1x14x4xf32>
      %55 = arith.addf %53, %54 : vector<2x1x14x4xf32>
      %56 = vector.extract_strided_slice %52 {offsets = [0, 0, 2, 0], sizes = [2, 1, 14, 4], strides = [1, 1, 1, 1]} : vector<2x1x16x4xf32> to vector<2x1x14x4xf32>
      %57 = arith.addf %55, %56 : vector<2x1x14x4xf32>
      %c0_45 = arith.constant 0 : index
      %c9 = arith.constant 9 : index
      %c1_46 = arith.constant 1 : index
      %c0_47 = arith.constant 0 : index
      %58 = vector.load %arg7[%c0_45, %c9, %c1_46, %c0_47] : memref<2x10x16x4xf32, #tpu.memory_space<vmem>>, vector<2x1x14x4xf32>
      tpu.vector_store %arg7[%c0_45, %c9, %c1_46, %c0_47], %57 {strides = array<i32>} : memref<2x10x16x4xf32, #tpu.memory_space<vmem>>, vector<2x1x14x4xf32>,
      %59 = vector.extract_strided_slice %52 {offsets = [0, 0, 0, 0], sizes = [2, 1, 1, 4], strides = [1, 1, 1, 1]} : vector<2x1x16x4xf32> to vector<2x1x1x4xf32>
      %60 = vector.extract_strided_slice %52 {offsets = [0, 0, 1, 0], sizes = [2, 1, 1, 4], strides = [1, 1, 1, 1]} : vector<2x1x16x4xf32> to vector<2x1x1x4xf32>
      %61 = arith.addf %59, %60 : vector<2x1x1x4xf32>
      %cst_48 = arith.constant 1.500000e+00 : f32
      %62 = vector.broadcast %cst_48 : f32 to vector<2x1x1x4xf32>
      %63 = arith.mulf %62, %61 : vector<2x1x1x4xf32>
      %c0_49 = arith.constant 0 : index
      %c9_50 = arith.constant 9 : index
      %c0_51 = arith.constant 0 : index
      %c0_52 = arith.constant 0 : index
      %64 = vector.load %arg7[%c0_49, %c9_50, %c0_51, %c0_52] : memref<2x10x16x4xf32, #tpu.memory_space<vmem>>, vector<2x1x1x4xf32>
      tpu.vector_store %arg7[%c0_49, %c9_50, %c0_51, %c0_52], %63 {strides = array<i32>} : memref<2x10x16x4xf32, #tpu.memory_space<vmem>>, vector<2x1x1x4xf32>,
      %65 = vector.extract_strided_slice %52 {offsets = [0, 0, 14, 0], sizes = [2, 1, 1, 4], strides = [1, 1, 1, 1]} : vector<2x1x16x4xf32> to vector<2x1x1x4xf32>
      %66 = vector.extract_strided_slice %52 {offsets = [0, 0, 15, 0], sizes = [2, 1, 1, 4], strides = [1, 1, 1, 1]} : vector<2x1x16x4xf32> to vector<2x1x1x4xf32>
      %67 = arith.addf %65, %66 : vector<2x1x1x4xf32>
      %cst_53 = arith.constant 1.500000e+00 : f32
      %68 = vector.broadcast %cst_53 : f32 to vector<2x1x1x4xf32>
      %69 = arith.mulf %68, %67 : vector<2x1x1x4xf32>
      %c0_54 = arith.constant 0 : index
      %c9_55 = arith.constant 9 : index
      %c15_56 = arith.constant 15 : index
      %c0_57 = arith.constant 0 : index
      %70 = vector.load %arg7[%c0_54, %c9_55, %c15_56, %c0_57] : memref<2x10x16x4xf32, #tpu.memory_space<vmem>>, vector<2x1x1x4xf32>
      tpu.vector_store %arg7[%c0_54, %c9_55, %c15_56, %c0_57], %69 {strides = array<i32>} : memref<2x10x16x4xf32, #tpu.memory_space<vmem>>, vector<2x1x1x4xf32>,
    } else {
    }
    %c0_20 = arith.constant 0 : index
    %c0_21 = arith.constant 0 : index
    %c0_22 = arith.constant 0 : index
    %c0_23 = arith.constant 0 : index
    %31 = vector.load %arg7[%c0_20, %c0_21, %c0_22, %c0_23] : memref<2x10x16x4xf32, #tpu.memory_space<vmem>>, vector<2x8x16x4xf32>
    %c0_24 = arith.constant 0 : index
    %c1_25 = arith.constant 1 : index
    %c0_26 = arith.constant 0 : index
    %c0_27 = arith.constant 0 : index
    %32 = vector.load %arg7[%c0_24, %c1_25, %c0_26, %c0_27] : memref<2x10x16x4xf32, #tpu.memory_space<vmem>>, vector<2x8x16x4xf32>
    %33 = arith.addf %31, %32 : vector<2x8x16x4xf32>
    %c0_28 = arith.constant 0 : index
    %c2 = arith.constant 2 : index
    %c0_29 = arith.constant 0 : index
    %c0_30 = arith.constant 0 : index
    %34 = vector.load %arg7[%c0_28, %c2, %c0_29, %c0_30] : memref<2x10x16x4xf32, #tpu.memory_space<vmem>>, vector<2x8x16x4xf32>
    %35 = arith.addf %33, %34 : vector<2x8x16x4xf32>
    %c0_i32_31 = arith.constant 0 : i32
    %36 = arith.cmpi eq, %arg1, %c0_i32_31 : i32
    %c0_i32_32 = arith.constant 0 : i32
    %37 = arith.cmpi eq, %arg2, %c0_i32_32 : i32
    %38 = arith.andi %36, %37 : i1
    %39 = arith.extui %38 : i1 to i32
    %c0_i32_33 = arith.constant 0 : i32
    %40 = arith.cmpi ne, %39, %c0_i32_33 : i32
    scf.if %40 {
      %cst_41 = arith.constant 0.000000e+00 : f32
      %52 = vector.broadcast %cst_41 : f32 to vector<1x1x1x4xf32>
      %c0_42 = arith.constant 0 : index
      %c0_43 = arith.constant 0 : index
      %c0_44 = arith.constant 0 : index
      %c0_45 = arith.constant 0 : index
      %53 = vector.load %arg8[%c0_42, %c0_43, %c0_44, %c0_45] : memref<1x1x1x4xf32, #tpu.memory_space<vmem>>, vector<1x1x1x4xf32>
      tpu.vector_store %arg8[%c0_42, %c0_43, %c0_44, %c0_45], %52 {strides = array<i32>} : memref<1x1x1x4xf32, #tpu.memory_space<vmem>>, vector<1x1x1x4xf32>,
      %cst_46 = arith.constant 0.000000e+00 : f32
      %54 = vector.broadcast %cst_46 : f32 to vector<1x1x1x4xf32>
      %c0_47 = arith.constant 0 : index
      %c0_48 = arith.constant 0 : index
      %c0_49 = arith.constant 0 : index
      %c0_50 = arith.constant 0 : index
      %55 = vector.load %arg9[%c0_47, %c0_48, %c0_49, %c0_50] : memref<1x1x1x4xf32, #tpu.memory_space<vmem>>, vector<1x1x1x4xf32>
      tpu.vector_store %arg9[%c0_47, %c0_48, %c0_49, %c0_50], %54 {strides = array<i32>} : memref<1x1x1x4xf32, #tpu.memory_space<vmem>>, vector<1x1x1x4xf32>,
    } else {
    }
    %c0_i32_34 = arith.constant 0 : i32
    %41 = arith.cmpi eq, %arg1, %c0_i32_34 : i32
    %42 = arith.extui %41 : i1 to i32
    %c0_i32_35 = arith.constant 0 : i32
    %43 = arith.cmpi ne, %42, %c0_i32_35 : i32
    scf.if %43 {
      %c0_41 = arith.constant 0 : index
      %c0_42 = arith.constant 0 : index
      %c0_43 = arith.constant 0 : index
      %c0_44 = arith.constant 0 : index
      %52 = vector.load %arg8[%c0_41, %c0_42, %c0_43, %c0_44] : memref<1x1x1x4xf32, #tpu.memory_space<vmem>>, vector<1x1x1x4xf32>
      %cst_45 = arith.constant dense<0.000000e+00> : vector<4xf32>
      %53 = vector.multi_reduction <add>, %35, %cst_45 [0, 1, 2] : vector<2x8x16x4xf32> to vector<4xf32>
      %54 = vector.shape_cast %53 : vector<4xf32> to vector<1x1x1x4xf32>
      %55 = arith.addf %52, %54 : vector<1x1x1x4xf32>
      %c0_46 = arith.constant 0 : index
      %c0_47 = arith.constant 0 : index
      %c0_48 = arith.constant 0 : index
      %c0_49 = arith.constant 0 : index
      %56 = vector.load %arg8[%c0_46, %c0_47, %c0_48, %c0_49] : memref<1x1x1x4xf32, #tpu.memory_space<vmem>>, vector<1x1x1x4xf32>
      tpu.vector_store %arg8[%c0_46, %c0_47, %c0_48, %c0_49], %55 {strides = array<i32>} : memref<1x1x1x4xf32, #tpu.memory_space<vmem>>, vector<1x1x1x4xf32>,
      %c0_50 = arith.constant 0 : index
      %c0_51 = arith.constant 0 : index
      %c0_52 = arith.constant 0 : index
      %c0_53 = arith.constant 0 : index
      %57 = vector.load %arg9[%c0_50, %c0_51, %c0_52, %c0_53] : memref<1x1x1x4xf32, #tpu.memory_space<vmem>>, vector<1x1x1x4xf32>
      %58 = arith.mulf %35, %35 : vector<2x8x16x4xf32>
      %cst_54 = arith.constant dense<0.000000e+00> : vector<4xf32>
      %59 = vector.multi_reduction <add>, %58, %cst_54 [0, 1, 2] : vector<2x8x16x4xf32> to vector<4xf32>
      %60 = vector.shape_cast %59 : vector<4xf32> to vector<1x1x1x4xf32>
      %61 = arith.addf %57, %60 : vector<1x1x1x4xf32>
      %c0_55 = arith.constant 0 : index
      %c0_56 = arith.constant 0 : index
      %c0_57 = arith.constant 0 : index
      %c0_58 = arith.constant 0 : index
      %62 = vector.load %arg9[%c0_55, %c0_56, %c0_57, %c0_58] : memref<1x1x1x4xf32, #tpu.memory_space<vmem>>, vector<1x1x1x4xf32>
      tpu.vector_store %arg9[%c0_55, %c0_56, %c0_57, %c0_58], %61 {strides = array<i32>} : memref<1x1x1x4xf32, #tpu.memory_space<vmem>>, vector<1x1x1x4xf32>,
    } else {
    }
    %c0_i32_36 = arith.constant 0 : i32
    %44 = arith.cmpi eq, %arg1, %c0_i32_36 : i32
    %c1_i32_37 = arith.constant 1 : i32
    %45 = arith.cmpi eq, %arg2, %c1_i32_37 : i32
    %46 = arith.andi %44, %45 : i1
    %47 = arith.extui %46 : i1 to i32
    %c0_i32_38 = arith.constant 0 : i32
    %48 = arith.cmpi ne, %47, %c0_i32_38 : i32
    scf.if %48 {
      %c0_41 = arith.constant 0 : index
      %c0_42 = arith.constant 0 : index
      %c0_43 = arith.constant 0 : index
      %c0_44 = arith.constant 0 : index
      %52 = vector.load %arg8[%c0_41, %c0_42, %c0_43, %c0_44] : memref<1x1x1x4xf32, #tpu.memory_space<vmem>>, vector<1x1x1x4xf32>
      %cst_45 = arith.constant 0.001953125 : f32
      %53 = vector.broadcast %cst_45 : f32 to vector<1x1x1x4xf32>
      %54 = arith.mulf %52, %53 : vector<1x1x1x4xf32>
      %c0_46 = arith.constant 0 : index
      %c0_47 = arith.constant 0 : index
      %c0_48 = arith.constant 0 : index
      %c0_49 = arith.constant 0 : index
      %55 = vector.load %arg9[%c0_46, %c0_47, %c0_48, %c0_49] : memref<1x1x1x4xf32, #tpu.memory_space<vmem>>, vector<1x1x1x4xf32>
      %cst_50 = arith.constant 0.001953125 : f32
      %56 = vector.broadcast %cst_50 : f32 to vector<1x1x1x4xf32>
      %57 = arith.mulf %55, %56 : vector<1x1x1x4xf32>
      %58 = arith.mulf %54, %54 : vector<1x1x1x4xf32>
      %59 = arith.subf %57, %58 : vector<1x1x1x4xf32>
      %cst_51 = arith.constant 0.000000e+00 : f32
      %60 = vector.broadcast %cst_51 : f32 to vector<1x1x1x4xf32>
      %61 = arith.maximumf %59, %60 : vector<1x1x1x4xf32>
      %c0_52 = arith.constant 0 : index
      %c0_53 = arith.constant 0 : index
      %c0_54 = arith.constant 0 : index
      %c0_55 = arith.constant 0 : index
      %62 = vector.load %arg8[%c0_52, %c0_53, %c0_54, %c0_55] : memref<1x1x1x4xf32, #tpu.memory_space<vmem>>, vector<1x1x1x4xf32>
      tpu.vector_store %arg8[%c0_52, %c0_53, %c0_54, %c0_55], %54 {strides = array<i32>} : memref<1x1x1x4xf32, #tpu.memory_space<vmem>>, vector<1x1x1x4xf32>,
      %cst_56 = arith.constant 8.09999997E-4 : f32
      %63 = vector.broadcast %cst_56 : f32 to vector<1x1x1x4xf32>
      %64 = arith.addf %61, %63 : vector<1x1x1x4xf32>
      %65 = math.rsqrt %64 : vector<1x1x1x4xf32>
      %c0_57 = arith.constant 0 : index
      %c0_58 = arith.constant 0 : index
      %c0_59 = arith.constant 0 : index
      %c0_60 = arith.constant 0 : index
      %66 = vector.load %arg9[%c0_57, %c0_58, %c0_59, %c0_60] : memref<1x1x1x4xf32, #tpu.memory_space<vmem>>, vector<1x1x1x4xf32>
      tpu.vector_store %arg9[%c0_57, %c0_58, %c0_59, %c0_60], %65 {strides = array<i32>} : memref<1x1x1x4xf32, #tpu.memory_space<vmem>>, vector<1x1x1x4xf32>,
    } else {
    }
    %c1_i32_39 = arith.constant 1 : i32
    %49 = arith.cmpi eq, %arg1, %c1_i32_39 : i32
    %50 = arith.extui %49 : i1 to i32
    %c0_i32_40 = arith.constant 0 : i32
    %51 = arith.cmpi ne, %50, %c0_i32_40 : i32
    scf.if %51 {
      %c0_41 = arith.constant 0 : index
      %c0_42 = arith.constant 0 : index
      %c0_43 = arith.constant 0 : index
      %c0_44 = arith.constant 0 : index
      %52 = vector.load %arg8[%c0_41, %c0_42, %c0_43, %c0_44] : memref<1x1x1x4xf32, #tpu.memory_space<vmem>>, vector<1x1x1x4xf32>
      %53 = vector.broadcast %52 : vector<1x1x1x4xf32> to vector<2x8x16x4xf32>
      %54 = arith.subf %35, %53 : vector<2x8x16x4xf32>
      %c0_45 = arith.constant 0 : index
      %c0_46 = arith.constant 0 : index
      %c0_47 = arith.constant 0 : index
      %c0_48 = arith.constant 0 : index
      %55 = vector.load %arg9[%c0_45, %c0_46, %c0_47, %c0_48] : memref<1x1x1x4xf32, #tpu.memory_space<vmem>>, vector<1x1x1x4xf32>
      %56 = vector.broadcast %55 : vector<1x1x1x4xf32> to vector<2x8x16x4xf32>
      %57 = arith.mulf %54, %56 : vector<2x8x16x4xf32>
      %c0_49 = arith.constant 0 : index
      %c0_50 = arith.constant 0 : index
      %c0_51 = arith.constant 0 : index
      %c0_52 = arith.constant 0 : index
      %58 = vector.load %arg6[%c0_49, %c0_50, %c0_51, %c0_52] : memref<2x8x16x4xf32, #tpu.memory_space<vmem>>, vector<2x8x16x4xf32>
      tpu.vector_store %arg6[%c0_49, %c0_50, %c0_51, %c0_52], %57 {strides = array<i32>} : memref<2x8x16x4xf32, #tpu.memory_space<vmem>>, vector<2x8x16x4xf32>,
    } else {
    }
    return
  }
  func.func @transform_0(%arg0: i32, %arg1: i32, %arg2: i32) -> (i32, i32, i32, i32) {
    %c0_i32 = arith.constant 0 : i32
    %c0_i32_0 = arith.constant 0 : i32
    %c0_i32_1 = arith.constant 0 : i32
    return %c0_i32, %arg2, %c0_i32_0, %arg0 : i32, i32, i32, i32
  }
  func.func @transform_1(%arg0: i32, %arg1: i32, %arg2: i32) -> (i32, i32, i32, i32) {
    %c8_i32 = arith.constant 8 : i32
    %0 = arith.muli %arg2, %c8_i32 : i32
    %c1_i32 = arith.constant 1 : i32
    %1 = arith.subi %0, %c1_i32 : i32
    %c0_i32 = arith.constant 0 : i32
    %2 = arith.maxsi %1, %c0_i32 : i32
    %c0_i32_0 = arith.constant 0 : i32
    %c0_i32_1 = arith.constant 0 : i32
    %c0_i32_2 = arith.constant 0 : i32
    return %c0_i32_0, %2, %c0_i32_1, %arg0 : i32, i32, i32, i32
  }
  func.func @transform_2(%arg0: i32, %arg1: i32, %arg2: i32) -> (i32, i32, i32, i32) {
    %c8_i32 = arith.constant 8 : i32
    %0 = arith.muli %arg2, %c8_i32 : i32
    %c8_i32_0 = arith.constant 8 : i32
    %1 = arith.addi %0, %c8_i32_0 : i32
    %c15_i32 = arith.constant 15 : i32
    %2 = arith.minsi %1, %c15_i32 : i32
    %c0_i32 = arith.constant 0 : i32
    %c0_i32_1 = arith.constant 0 : i32
    %c0_i32_2 = arith.constant 0 : i32
    return %c0_i32, %2, %c0_i32_1, %arg0 : i32, i32, i32, i32
  }
  func.func @transform_3(%arg0: i32, %arg1: i32, %arg2: i32) -> (i32, i32, i32, i32) {
    %0 = arith.muli %arg2, %arg1 : i32
    %c0_i32 = arith.constant 0 : i32
    %c0_i32_0 = arith.constant 0 : i32
    %c0_i32_1 = arith.constant 0 : i32
    return %c0_i32, %0, %c0_i32_0, %arg0 : i32, i32, i32, i32
  }
}

</mosaic_0001>

<llo_original>
// kernel: tpu_custom_call.1
$region0: #{tpu_custom_call.1}
  #allocation0 [shape = 'u32[]', space=smem, size = 0x4, offset = 0x4, fixed_abs, tag = 'smem constant byte address 0x4 - core index']
  #allocation1 [shape = 'u32[144,128]{1,0:T(1,128)}', space=vmem, size = 0x12000, scoped, tag = 'internal scratch']
  #allocation2 [shape = 'f32[2,10,16,4]{3,2,1,0:T(8,128)}', space=vmem, size = 0x28000, scoped, tag = 'scratch operand']
  #allocation3 [shape = 'f32[1,1,1,4]{3,2,1,0:T(1,128)}', space=vmem, size = 0x200, scoped, tag = 'scratch operand']
  #allocation4 [shape = 'f32[1,1,1,4]{3,2,1,0:T(1,128)}', space=vmem, size = 0x200, scoped, tag = 'scratch operand']
  %s0 = inlined_call_operand.vmem [shape: f32[2,16,16,4], index: 0, kind: input, shape index: {}]
  %s1 = inlined_call_operand.vmem [shape: f32[2,16,16,4], index: 1, kind: input, shape index: {}]
  %s2 = inlined_call_operand.vmem [shape: f32[2,16,16,4], index: 2, kind: input, shape index: {}]
  %s3 = inlined_call_operand.vmem [shape: f32[2,16,16,4], index: 3, kind: output, shape index: {}]
  %s4 = sld [smem:[#allocation0]]
  $region225: #{tpu_custom_call.1} parent=0
    _
  %s6 = ssub.s32 1, %s4
  %s7 = scalar_select 0, %s6, %s4
  $region1: #{tpu_custom_call.1} parent=0
    #allocation5 [shape = 'u8[262144]{0}', space=vmem, size = 0x40000, scoped, tag = 'input window, operand 0']
    #allocation6 [shape = 'u8[32768]{0}', space=vmem, size = 0x8000, scoped, tag = 'input window, operand 1']
    #allocation7 [shape = 'u8[32768]{0}', space=vmem, size = 0x8000, scoped, tag = 'input window, operand 2']
    #allocation8 [shape = 'u8[262144]{0}', space=vmem, size = 0x40000, scoped, tag = 'output window, operand 0']
    loop: start=0, step=1, limit=6
    $region2: #{tpu_custom_call.1} parent=1 // loop_pre_header
      _
    $region3: #{tpu_custom_call.1} parent=1 // loop_header
      %s9 = sphi 0, %s13
      %p10 = scmp.ge.s32.totalorder %s9, 6
      %s16 = sphi 0, %s35
      %s17 = sphi 0, %s31
      %s18 = sphi 0, %s27
      %s19 = sphi 0, %s16
      %s20 = sphi 0, %s17
      %s21 = sphi 0, %s18
      %s22 = sphi 0, %s19
      %s23 = sphi 0, %s20
      %s24 = sphi 0, %s21
      %s40 = sphi 0, %s42
      %s43 = sphi 0, %s40
      %s44 = sphi 0, %s43
      %s60 = sphi 0, %s44
      %s76 = sphi 0, %s78
      %s79 = sphi 0, %s76
      %s80 = sphi 0, %s79
      %s96 = sphi 0, %s80
      %s112 = sphi 0, %s114
      %s115 = sphi 0, %s112
      %s116 = sphi 0, %s115
      %s132 = sphi 0, %s116
      %s142 = sphi 0, %s144
      %s145 = sphi 0, %s142
      %s146 = sphi 0, %s145
      %s162 = sphi 0, %s146
    $region4: #{tpu_custom_call.1} parent=1 // loop_header_branch
      %12 = sbr.rel (%p10) target = $region8
    $region5: #{tpu_custom_call.1} parent=1 // loop_body
      %s14 = ssub.s32 %s9, 1
      %s15 = ssub.s32 %s9, 2
      %s25 = sadd.s32 1, %s18
      %p26 = scmp.ge.s32.totalorder %s25, 2
      %s27 = scalar_select %p26, 0, %s25
      %s28 = sadd.s32 1, %s17
      %s29 = scalar_select %p26, %s28, %s17
      %p30 = scmp.ge.s32.totalorder %s29, 2
      %s31 = scalar_select %p30, 0, %s29
      %s32 = sadd.s32 1, %s16
      %s33 = scalar_select %p30, %s32, %s16
      %p34 = scmp.ge.s32.totalorder %s33, 1
      %s35 = scalar_select %p34, 0, %s33
      %s36 = ssub.s32 %s18, %s27
      %s37 = ssub.s32 %s16, %s35
      %s38 = sor.u32 %s36, %s37
      %p39 = scmp.eq.s32.totalorder %s38, 0
      %s41 = sadd.s32 %s40, 1
      %s42 = scalar_select %p39, %s40, %s41
      %p45 = pneg %p39
      %p46 = scmp.eq.s32.totalorder %s9, 3
      %p47 = por %p45, %p46
      %p48 = scmp.ne.s32.totalorder %s40, %s43
      %p49 = scmp.eq.s32.totalorder %s9, 0
      %p50 = por %p48, %p49
      %p51 = scmp.ne.s32.totalorder %s40, %s43
      %p52 = scmp.eq.s32.totalorder %s14, 3
      %p53 = por %p51, %p52
      %p54 = scmp.ne.s32.totalorder %s43, %s44
      %p55 = scmp.eq.s32.totalorder %s14, 0
      %p56 = por %p54, %p55
      %p57 = scmp.ne.s32.totalorder %s43, %s44
      %p58 = scmp.eq.s32.totalorder %s15, 3
      %p59 = por %p57, %p58
      %p61 = scmp.ne.s32.totalorder %s44, %s60
      %p62 = scmp.eq.s32.totalorder %s15, 0
      %p63 = por %p61, %p62
      %s64 = smul.u32 %s18, 8
      %s65 = ssub.s32 %s64, 1
      %p66 = scmp.gt.s32.totalorder %s65, 0
      %s67 = scalar_select %p66, %s65, 0
      %s68 = smul.u32 %s27, 8
      %s69 = ssub.s32 %s68, 1
      %p70 = scmp.gt.s32.totalorder %s69, 0
      %s71 = scalar_select %p70, %s69, 0
      %s72 = ssub.s32 %s67, %s71
      %s73 = ssub.s32 %s16, %s35
      %s74 = sor.u32 %s72, %s73
      %p75 = scmp.eq.s32.totalorder %s74, 0
      %s77 = sadd.s32 %s76, 1
      %s78 = scalar_select %p75, %s76, %s77
      %p81 = pneg %p75
      %p82 = scmp.eq.s32.totalorder %s9, 3
      %p83 = por %p81, %p82
      %p84 = scmp.ne.s32.totalorder %s76, %s79
      %p85 = scmp.eq.s32.totalorder %s9, 0
      %p86 = por %p84, %p85
      %p87 = scmp.ne.s32.totalorder %s76, %s79
      %p88 = scmp.eq.s32.totalorder %s14, 3
      %p89 = por %p87, %p88
      %p90 = scmp.ne.s32.totalorder %s79, %s80
      %p91 = scmp.eq.s32.totalorder %s14, 0
      %p92 = por %p90, %p91
      %p93 = scmp.ne.s32.totalorder %s79, %s80
      %p94 = scmp.eq.s32.totalorder %s15, 3
      %p95 = por %p93, %p94
      %p97 = scmp.ne.s32.totalorder %s80, %s96
      %p98 = scmp.eq.s32.totalorder %s15, 0
      %p99 = por %p97, %p98
      %s100 = smul.u32 %s18, 8
      %s101 = sadd.s32 %s100, 8
      %p102 = scmp.lt.s32.totalorder %s101, 15
      %s103 = scalar_select %p102, %s101, 15
      %s104 = smul.u32 %s27, 8
      %s105 = sadd.s32 %s104, 8
      %p106 = scmp.lt.s32.totalorder %s105, 15
      %s107 = scalar_select %p106, %s105, 15
      %s108 = ssub.s32 %s103, %s107
      %s109 = ssub.s32 %s16, %s35
      %s110 = sor.u32 %s108, %s109
      %p111 = scmp.eq.s32.totalorder %s110, 0
      %s113 = sadd.s32 %s112, 1
      %s114 = scalar_select %p111, %s112, %s113
      %p117 = pneg %p111
      %p118 = scmp.eq.s32.totalorder %s9, 3
      %p119 = por %p117, %p118
      %p120 = scmp.ne.s32.totalorder %s112, %s115
      %p121 = scmp.eq.s32.totalorder %s9, 0
      %p122 = por %p120, %p121
      %p123 = scmp.ne.s32.totalorder %s112, %s115
      %p124 = scmp.eq.s32.totalorder %s14, 3
      %p125 = por %p123, %p124
      %p126 = scmp.ne.s32.totalorder %s115, %s116
      %p127 = scmp.eq.s32.totalorder %s14, 0
      %p128 = por %p126, %p127
      %p129 = scmp.ne.s32.totalorder %s115, %s116
      %p130 = scmp.eq.s32.totalorder %s15, 3
      %p131 = por %p129, %p130
      %p133 = scmp.ne.s32.totalorder %s116, %s132
      %p134 = scmp.eq.s32.totalorder %s15, 0
      %p135 = por %p133, %p134
      %s136 = smul.u32 %s18, %s17
      %s137 = smul.u32 %s27, %s31
      %s138 = ssub.s32 %s136, %s137
      %s139 = ssub.s32 %s16, %s35
      %s140 = sor.u32 %s138, %s139
      %p141 = scmp.eq.s32.totalorder %s140, 0
      %s143 = sadd.s32 %s142, 1
      %s144 = scalar_select %p141, %s142, %s143
      %p147 = pneg %p141
      %p148 = scmp.eq.s32.totalorder %s9, 3
      %p149 = por %p147, %p148
      %p150 = scmp.ne.s32.totalorder %s142, %s145
      %p151 = scmp.eq.s32.totalorder %s9, 0
      %p152 = por %p150, %p151
      %p153 = scmp.ne.s32.totalorder %s142, %s145
      %p154 = scmp.eq.s32.totalorder %s14, 3
      %p155 = por %p153, %p154
      %p156 = scmp.ne.s32.totalorder %s145, %s146
      %p157 = scmp.eq.s32.totalorder %s14, 0
      %p158 = por %p156, %p157
      %p159 = scmp.ne.s32.totalorder %s145, %s146
      %p160 = scmp.eq.s32.totalorder %s15, 3
      %p161 = por %p159, %p160
      %p163 = scmp.ne.s32.totalorder %s146, %s162
      %p164 = scmp.eq.s32.totalorder %s15, 0
      %p165 = por %p163, %p164
      %p166 = scmp.le.s32.totalorder 1, %s9
      %p167 = scmp.lt.s32.totalorder %s9, 5
      %p168 = pnand %p166, %p167
      %p169 = pneg %p168
      // Predicated region
      $region9: #{tpu_custom_call.1} parent=5 // pred_check
        _
      $region10: #{tpu_custom_call.1} parent=5 // pred_check_branch
        %171 = sbr.rel (%p168) target = $region12
      $region11: #{tpu_custom_call.1} parent=5 // pred_region
        %s172 = ssub.s32 %s9, 1
      $region12: #{tpu_custom_call.1} parent=5 // pred_fallthru
        _
      %p173 = scmp.lt.s32.totalorder %s9, 4
      // Predicated region
      $region13: #{tpu_custom_call.1} parent=5 // pred_check
        %p174 = pneg %p173
      $region14: #{tpu_custom_call.1} parent=5 // pred_check_branch
        %176 = sbr.rel (%p174) target = $region16
      $region15: #{tpu_custom_call.1} parent=5 // pred_region
        // Predicated region
        $region17: #{tpu_custom_call.1} parent=15 // pred_check
          %p177 = pneg %p50
        $region18: #{tpu_custom_call.1} parent=15 // pred_check_branch
          %179 = sbr.rel (%p177) target = $region20
        $region19: #{tpu_custom_call.1} parent=15 // pred_region
          %s180 = sand.u32 %s40, 1
          %s181 = sand.u32 %s40, 1
          %s182 = smul.addr %s181, 256
          %s183 = scalar_lea.vmem [#allocation5], %s182
          %s184 = smul.u32 8, %s18
          %s185 = smul.addr %s184, 2
          %s186 = sadd.s32 %s16, %s185
          %s187 = smul.addr %s186, 8
          %s188 = scalar_lea.vmem %s0, %s187
          // Predicated region
          $region21: #{tpu_custom_call.1} parent=19 // pred_check
            _
          $region22: #{tpu_custom_call.1} parent=19 // pred_check_branch
            %190 = sbr.rel (0) target = $region24
          $region23: #{tpu_custom_call.1} parent=19 // pred_region
            // Predicated region
            $region25: #{tpu_custom_call.1} parent=23 // pred_check
              _
            $region26: #{tpu_custom_call.1} parent=23 // pred_check_branch
              %192 = sbr.rel (0) target = $region28
            $region27: #{tpu_custom_call.1} parent=23 // pred_region
              // Predicated region
              $region40: #{tpu_custom_call.1} parent=27 // pred_check
                _
              $region41: #{tpu_custom_call.1} parent=27 // pred_check_branch
                %269 = sbr.rel (0) target = $region43
              $region42: #{tpu_custom_call.1} parent=27 // pred_region
                loop: start=0, step=1, limit=1
                $region44: #{tpu_custom_call.1} parent=42 // loop_pre_header
                  _
                $region45: #{tpu_custom_call.1} parent=42 // loop_header
                  %s271 = sphi 0, %s275
                  %p272 = scmp.ge.s32.totalorder %s271, 1
                  %s276 = sphi %s188, %s188
                  %s277 = sphi %s183, %s183
                $region46: #{tpu_custom_call.1} parent=42 // loop_header_branch
                  %274 = sbr.rel (%p272) target = $region50
                $region47: #{tpu_custom_call.1} parent=42 // loop_body
                  %v278 = vld [vmem:[%s276] sm:$0xff]
                  %279 = vst [vmem:[%s277] sm:$0xff] %v278
                  %v280 = vld [vmem:[%s276 + $0x8] sm:$0xff]
                  %281 = vst [vmem:[%s277 + $0x8] sm:$0xff] %v280
                  %v282 = vld [vmem:[%s276 + $0x10] sm:$0xff]
                  %283 = vst [vmem:[%s277 + $0x10] sm:$0xff] %v282
                  %v284 = vld [vmem:[%s276 + $0x18] sm:$0xff]
                  %285 = vst [vmem:[%s277 + $0x18] sm:$0xff] %v284
                  %v286 = vld [vmem:[%s276 + $0x20] sm:$0xff]
                  %287 = vst [vmem:[%s277 + $0x20] sm:$0xff] %v286
                  %v288 = vld [vmem:[%s276 + $0x28] sm:$0xff]
                  %289 = vst [vmem:[%s277 + $0x28] sm:$0xff] %v288
                  %v290 = vld [vmem:[%s276 + $0x30] sm:$0xff]
                  %291 = vst [vmem:[%s277 + $0x30] sm:$0xff] %v290
                  %v292 = vld [vmem:[%s276 + $0x38] sm:$0xff]
                  %293 = vst [vmem:[%s277 + $0x38] sm:$0xff] %v292
                  %v294 = vld [vmem:[%s276 + $0x40] sm:$0xff]
                  %295 = vst [vmem:[%s277 + $0x40] sm:$0xff] %v294
                  %v296 = vld [vmem:[%s276 + $0x48] sm:$0xff]
                  %297 = vst [vmem:[%s277 + $0x48] sm:$0xff] %v296
                  %v298 = vld [vmem:[%s276 + $0x50] sm:$0xff]
                  %299 = vst [vmem:[%s277 + $0x50] sm:$0xff] %v298
                  %v300 = vld [vmem:[%s276 + $0x58] sm:$0xff]
                  %301 = vst [vmem:[%s277 + $0x58] sm:$0xff] %v300
                  %v302 = vld [vmem:[%s276 + $0x60] sm:$0xff]
                  %303 = vst [vmem:[%s277 + $0x60] sm:$0xff] %v302
                  %v304 = vld [vmem:[%s276 + $0x68] sm:$0xff]
                  %305 = vst [vmem:[%s277 + $0x68] sm:$0xff] %v304
                  %v306 = vld [vmem:[%s276 + $0x70] sm:$0xff]
                  %307 = vst [vmem:[%s277 + $0x70] sm:$0xff] %v306
                  %v308 = vld [vmem:[%s276 + $0x78] sm:$0xff]
                  %309 = vst [vmem:[%s277 + $0x78] sm:$0xff] %v308
                  %v310 = vld [vmem:[%s276 + $0x100] sm:$0xff]
                  %311 = vst [vmem:[%s277 + $0x80] sm:$0xff] %v310
                  %v312 = vld [vmem:[%s276 + $0x108] sm:$0xff]
                  %313 = vst [vmem:[%s277 + $0x88] sm:$0xff] %v312
                  %v314 = vld [vmem:[%s276 + $0x110] sm:$0xff]
                  %315 = vst [vmem:[%s277 + $0x90] sm:$0xff] %v314
                  %v316 = vld [vmem:[%s276 + $0x118] sm:$0xff]
                  %317 = vst [vmem:[%s277 + $0x98] sm:$0xff] %v316
                  %v318 = vld [vmem:[%s276 + $0x120] sm:$0xff]
                  %319 = vst [vmem:[%s277 + $0xa0] sm:$0xff] %v318
                  %v320 = vld [vmem:[%s276 + $0x128] sm:$0xff]
                  %321 = vst [vmem:[%s277 + $0xa8] sm:$0xff] %v320
                  %v322 = vld [vmem:[%s276 + $0x130] sm:$0xff]
                  %323 = vst [vmem:[%s277 + $0xb0] sm:$0xff] %v322
                  %v324 = vld [vmem:[%s276 + $0x138] sm:$0xff]
                  %325 = vst [vmem:[%s277 + $0xb8] sm:$0xff] %v324
                  %v326 = vld [vmem:[%s276 + $0x140] sm:$0xff]
                  %327 = vst [vmem:[%s277 + $0xc0] sm:$0xff] %v326
                  %v328 = vld [vmem:[%s276 + $0x148] sm:$0xff]
                  %329 = vst [vmem:[%s277 + $0xc8] sm:$0xff] %v328
                  %v330 = vld [vmem:[%s276 + $0x150] sm:$0xff]
                  %331 = vst [vmem:[%s277 + $0xd0] sm:$0xff] %v330
                  %v332 = vld [vmem:[%s276 + $0x158] sm:$0xff]
                  %333 = vst [vmem:[%s277 + $0xd8] sm:$0xff] %v332
                  %v334 = vld [vmem:[%s276 + $0x160] sm:$0xff]
                  %335 = vst [vmem:[%s277 + $0xe0] sm:$0xff] %v334
                  %v336 = vld [vmem:[%s276 + $0x168] sm:$0xff]
                  %337 = vst [vmem:[%s277 + $0xe8] sm:$0xff] %v336
                  %v338 = vld [vmem:[%s276 + $0x170] sm:$0xff]
                  %339 = vst [vmem:[%s277 + $0xf0] sm:$0xff] %v338
                  %v340 = vld [vmem:[%s276 + $0x178] sm:$0xff]
                  %341 = vst [vmem:[%s277 + $0xf8] sm:$0xff] %v340
                $region48: #{tpu_custom_call.1} parent=42 // loop_footer
                  %s275 = sadd.s32 1, %s271
                $region49: #{tpu_custom_call.1} parent=42 // loop_footer_branch
                  %270 = sbr.rel target = $region45
                $region50: #{tpu_custom_call.1} parent=42 // loop_exit
                  _
              $region43: #{tpu_custom_call.1} parent=27 // pred_fallthru
                _
              // Predicated region
              $region51: #{tpu_custom_call.1} parent=27 // pred_check
                _
              $region52: #{tpu_custom_call.1} parent=27 // pred_check_branch
                %343 = sbr.rel target = $region54
              $region53: #{tpu_custom_call.1} parent=27 // pred_region
                _
              $region54: #{tpu_custom_call.1} parent=27 // pred_fallthru
                _
            $region28: #{tpu_custom_call.1} parent=23 // pred_fallthru
              _
            // Predicated region
            $region29: #{tpu_custom_call.1} parent=23 // pred_check
              _
            $region30: #{tpu_custom_call.1} parent=23 // pred_check_branch
              %194 = sbr.rel target = $region32
            $region31: #{tpu_custom_call.1} parent=23 // pred_region
              loop: start=0, step=1, limit=1
              $region33: #{tpu_custom_call.1} parent=31 // loop_pre_header
                _
              $region34: #{tpu_custom_call.1} parent=31 // loop_header
                %s197 = sphi 0, %s201
                %p198 = scmp.ge.s32.totalorder %s197, 1
                %s202 = sphi %s188, %s188
                %s203 = sphi %s183, %s183
              $region35: #{tpu_custom_call.1} parent=31 // loop_header_branch
                %200 = sbr.rel (%p198) target = $region39
              $region36: #{tpu_custom_call.1} parent=31 // loop_body
                %v204 = vld [vmem:[%s202] sm:$0xff]
                %205 = vst [vmem:[%s203] sm:$0xff] %v204
                %v206 = vld [vmem:[%s202 + $0x8] sm:$0xff]
                %207 = vst [vmem:[%s203 + $0x8] sm:$0xff] %v206
                %v208 = vld [vmem:[%s202 + $0x10] sm:$0xff]
                %209 = vst [vmem:[%s203 + $0x10] sm:$0xff] %v208
                %v210 = vld [vmem:[%s202 + $0x18] sm:$0xff]
                %211 = vst [vmem:[%s203 + $0x18] sm:$0xff] %v210
                %v212 = vld [vmem:[%s202 + $0x20] sm:$0xff]
                %213 = vst [vmem:[%s203 + $0x20] sm:$0xff] %v212
                %v214 = vld [vmem:[%s202 + $0x28] sm:$0xff]
                %215 = vst [vmem:[%s203 + $0x28] sm:$0xff] %v214
                %v216 = vld [vmem:[%s202 + $0x30] sm:$0xff]
                %217 = vst [vmem:[%s203 + $0x30] sm:$0xff] %v216
                %v218 = vld [vmem:[%s202 + $0x38] sm:$0xff]
                %219 = vst [vmem:[%s203 + $0x38] sm:$0xff] %v218
                %v220 = vld [vmem:[%s202 + $0x40] sm:$0xff]
                %221 = vst [vmem:[%s203 + $0x40] sm:$0xff] %v220
                %v222 = vld [vmem:[%s202 + $0x48] sm:$0xff]
                %223 = vst [vmem:[%s203 + $0x48] sm:$0xff] %v222
                %v224 = vld [vmem:[%s202 + $0x50] sm:$0xff]
                %225 = vst [vmem:[%s203 + $0x50] sm:$0xff] %v224
                %v226 = vld [vmem:[%s202 + $0x58] sm:$0xff]
                %227 = vst [vmem:[%s203 + $0x58] sm:$0xff] %v226
                %v228 = vld [vmem:[%s202 + $0x60] sm:$0xff]
                %229 = vst [vmem:[%s203 + $0x60] sm:$0xff] %v228
                %v230 = vld [vmem:[%s202 + $0x68] sm:$0xff]
                %231 = vst [vmem:[%s203 + $0x68] sm:$0xff] %v230
                %v232 = vld [vmem:[%s202 + $0x70] sm:$0xff]
                %233 = vst [vmem:[%s203 + $0x70] sm:$0xff] %v232
                %v234 = vld [vmem:[%s202 + $0x78] sm:$0xff]
                %235 = vst [vmem:[%s203 + $0x78] sm:$0xff] %v234
                %v236 = vld [vmem:[%s202 + $0x100] sm:$0xff]
                %237 = vst [vmem:[%s203 + $0x80] sm:$0xff] %v236
                %v238 = vld [vmem:[%s202 + $0x108] sm:$0xff]
                %239 = vst [vmem:[%s203 + $0x88] sm:$0xff] %v238
                %v240 = vld [vmem:[%s202 + $0x110] sm:$0xff]
                %241 = vst [vmem:[%s203 + $0x90] sm:$0xff] %v240
                %v242 = vld [vmem:[%s202 + $0x118] sm:$0xff]
                %243 = vst [vmem:[%s203 + $0x98] sm:$0xff] %v242
                %v244 = vld [vmem:[%s202 + $0x120] sm:$0xff]
                %245 = vst [vmem:[%s203 + $0xa0] sm:$0xff] %v244
                %v246 = vld [vmem:[%s202 + $0x128] sm:$0xff]
                %247 = vst [vmem:[%s203 + $0xa8] sm:$0xff] %v246
                %v248 = vld [vmem:[%s202 + $0x130] sm:$0xff]
                %249 = vst [vmem:[%s203 + $0xb0] sm:$0xff] %v248
                %v250 = vld [vmem:[%s202 + $0x138] sm:$0xff]
                %251 = vst [vmem:[%s203 + $0xb8] sm:$0xff] %v250
                %v252 = vld [vmem:[%s202 + $0x140] sm:$0xff]
                %253 = vst [vmem:[%s203 + $0xc0] sm:$0xff] %v252
                %v254 = vld [vmem:[%s202 + $0x148] sm:$0xff]
                %255 = vst [vmem:[%s203 + $0xc8] sm:$0xff] %v254
                %v256 = vld [vmem:[%s202 + $0x150] sm:$0xff]
                %257 = vst [vmem:[%s203 + $0xd0] sm:$0xff] %v256
                %v258 = vld [vmem:[%s202 + $0x158] sm:$0xff]
                %259 = vst [vmem:[%s203 + $0xd8] sm:$0xff] %v258
                %v260 = vld [vmem:[%s202 + $0x160] sm:$0xff]
                %261 = vst [vmem:[%s203 + $0xe0] sm:$0xff] %v260
                %v262 = vld [vmem:[%s202 + $0x168] sm:$0xff]
                %263 = vst [vmem:[%s203 + $0xe8] sm:$0xff] %v262
                %v264 = vld [vmem:[%s202 + $0x170] sm:$0xff]
                %265 = vst [vmem:[%s203 + $0xf0] sm:$0xff] %v264
                %v266 = vld [vmem:[%s202 + $0x178] sm:$0xff]
                %267 = vst [vmem:[%s203 + $0xf8] sm:$0xff] %v266
              $region37: #{tpu_custom_call.1} parent=31 // loop_footer
                %s201 = sadd.s32 1, %s197
              $region38: #{tpu_custom_call.1} parent=31 // loop_footer_branch
                %196 = sbr.rel target = $region34
              $region39: #{tpu_custom_call.1} parent=31 // loop_exit
                _
            $region32: #{tpu_custom_call.1} parent=23 // pred_fallthru
              _
          $region24: #{tpu_custom_call.1} parent=19 // pred_fallthru
            _
          %344 = vnop
        $region20: #{tpu_custom_call.1} parent=15 // pred_fallthru
          _
        // Predicated region
        $region55: #{tpu_custom_call.1} parent=15 // pred_check
          %p345 = pneg %p86
        $region56: #{tpu_custom_call.1} parent=15 // pred_check_branch
          %347 = sbr.rel (%p345) target = $region58
        $region57: #{tpu_custom_call.1} parent=15 // pred_region
          %s348 = sand.u32 %s76, 1
          %s349 = sand.u32 %s76, 1
          %s350 = smul.addr %s349, 32
          %s351 = scalar_lea.vmem [#allocation6], %s350
          %s352 = smul.u32 %s18, 8
          %s353 = ssub.s32 %s352, 1
          %p354 = scmp.gt.s32.totalorder %s353, 0
          %s355 = scalar_select %p354, %s353, 0
          %s356 = smul.addr %s355, 2
          %s357 = sadd.s32 %s16, %s356
          %s358 = smul.addr %s357, 8
          %s359 = scalar_lea.vmem %s1, %s358
          // Predicated region
          $region59: #{tpu_custom_call.1} parent=57 // pred_check
            _
          $region60: #{tpu_custom_call.1} parent=57 // pred_check_branch
            %361 = sbr.rel (0) target = $region62
          $region61: #{tpu_custom_call.1} parent=57 // pred_region
            // Predicated region
            $region63: #{tpu_custom_call.1} parent=61 // pred_check
              _
            $region64: #{tpu_custom_call.1} parent=61 // pred_check_branch
              %363 = sbr.rel (0) target = $region66
            $region65: #{tpu_custom_call.1} parent=61 // pred_region
              // Predicated region
              $region78: #{tpu_custom_call.1} parent=65 // pred_check
                _
              $region79: #{tpu_custom_call.1} parent=65 // pred_check_branch
                %384 = sbr.rel (0) target = $region81
              $region80: #{tpu_custom_call.1} parent=65 // pred_region
                loop: start=0, step=1, limit=1
                $region82: #{tpu_custom_call.1} parent=80 // loop_pre_header
                  _
                $region83: #{tpu_custom_call.1} parent=80 // loop_header
                  %s386 = sphi 0, %s390
                  %p387 = scmp.ge.s32.totalorder %s386, 1
                  %s391 = sphi %s359, %s359
                  %s392 = sphi %s351, %s351
                $region84: #{tpu_custom_call.1} parent=80 // loop_header_branch
                  %389 = sbr.rel (%p387) target = $region88
                $region85: #{tpu_custom_call.1} parent=80 // loop_body
                  %v393 = vld [vmem:[%s391] sm:$0xff]
                  %394 = vst [vmem:[%s392] sm:$0xff] %v393
                  %v395 = vld [vmem:[%s391 + $0x8] sm:$0xff]
                  %396 = vst [vmem:[%s392 + $0x8] sm:$0xff] %v395
                  %v397 = vld [vmem:[%s391 + $0x100] sm:$0xff]
                  %398 = vst [vmem:[%s392 + $0x10] sm:$0xff] %v397
                  %v399 = vld [vmem:[%s391 + $0x108] sm:$0xff]
                  %400 = vst [vmem:[%s392 + $0x18] sm:$0xff] %v399
                $region86: #{tpu_custom_call.1} parent=80 // loop_footer
                  %s390 = sadd.s32 1, %s386
                $region87: #{tpu_custom_call.1} parent=80 // loop_footer_branch
                  %385 = sbr.rel target = $region83
                $region88: #{tpu_custom_call.1} parent=80 // loop_exit
                  _
              $region81: #{tpu_custom_call.1} parent=65 // pred_fallthru
                _
              // Predicated region
              $region89: #{tpu_custom_call.1} parent=65 // pred_check
                _
              $region90: #{tpu_custom_call.1} parent=65 // pred_check_branch
                %402 = sbr.rel target = $region92
              $region91: #{tpu_custom_call.1} parent=65 // pred_region
                _
              $region92: #{tpu_custom_call.1} parent=65 // pred_fallthru
                _
            $region66: #{tpu_custom_call.1} parent=61 // pred_fallthru
              _
            // Predicated region
            $region67: #{tpu_custom_call.1} parent=61 // pred_check
              _
            $region68: #{tpu_custom_call.1} parent=61 // pred_check_branch
              %365 = sbr.rel target = $region70
            $region69: #{tpu_custom_call.1} parent=61 // pred_region
              loop: start=0, step=1, limit=1
              $region71: #{tpu_custom_call.1} parent=69 // loop_pre_header
                _
              $region72: #{tpu_custom_call.1} parent=69 // loop_header
                %s368 = sphi 0, %s372
                %p369 = scmp.ge.s32.totalorder %s368, 1
                %s373 = sphi %s359, %s359
                %s374 = sphi %s351, %s351
              $region73: #{tpu_custom_call.1} parent=69 // loop_header_branch
                %371 = sbr.rel (%p369) target = $region77
              $region74: #{tpu_custom_call.1} parent=69 // loop_body
                %v375 = vld [vmem:[%s373] sm:$0xff]
                %376 = vst [vmem:[%s374] sm:$0xff] %v375
                %v377 = vld [vmem:[%s373 + $0x8] sm:$0xff]
                %378 = vst [vmem:[%s374 + $0x8] sm:$0xff] %v377
                %v379 = vld [vmem:[%s373 + $0x100] sm:$0xff]
                %380 = vst [vmem:[%s374 + $0x10] sm:$0xff] %v379
                %v381 = vld [vmem:[%s373 + $0x108] sm:$0xff]
                %382 = vst [vmem:[%s374 + $0x18] sm:$0xff] %v381
              $region75: #{tpu_custom_call.1} parent=69 // loop_footer
                %s372 = sadd.s32 1, %s368
              $region76: #{tpu_custom_call.1} parent=69 // loop_footer_branch
                %367 = sbr.rel target = $region72
              $region77: #{tpu_custom_call.1} parent=69 // loop_exit
                _
            $region70: #{tpu_custom_call.1} parent=61 // pred_fallthru
              _
          $region62: #{tpu_custom_call.1} parent=57 // pred_fallthru
            _
          %403 = vnop
        $region58: #{tpu_custom_call.1} parent=15 // pred_fallthru
          _
        // Predicated region
        $region93: #{tpu_custom_call.1} parent=15 // pred_check
          %p404 = pneg %p122
        $region94: #{tpu_custom_call.1} parent=15 // pred_check_branch
          %406 = sbr.rel (%p404) target = $region96
        $region95: #{tpu_custom_call.1} parent=15 // pred_region
          %s407 = sand.u32 %s112, 1
          %s408 = sand.u32 %s112, 1
          %s409 = smul.addr %s408, 32
          %s410 = scalar_lea.vmem [#allocation7], %s409
          %s411 = smul.u32 %s18, 8
          %s412 = sadd.s32 %s411, 8
          %p413 = scmp.lt.s32.totalorder %s412, 15
          %s414 = scalar_select %p413, %s412, 15
          %s415 = smul.addr %s414, 2
          %s416 = sadd.s32 %s16, %s415
          %s417 = smul.addr %s416, 8
          %s418 = scalar_lea.vmem %s2, %s417
          // Predicated region
          $region97: #{tpu_custom_call.1} parent=95 // pred_check
            _
          $region98: #{tpu_custom_call.1} parent=95 // pred_check_branch
            %420 = sbr.rel (0) target = $region100
          $region99: #{tpu_custom_call.1} parent=95 // pred_region
            // Predicated region
            $region101: #{tpu_custom_call.1} parent=99 // pred_check
              _
            $region102: #{tpu_custom_call.1} parent=99 // pred_check_branch
              %422 = sbr.rel (0) target = $region104
            $region103: #{tpu_custom_call.1} parent=99 // pred_region
              // Predicated region
              $region116: #{tpu_custom_call.1} parent=103 // pred_check
                _
              $region117: #{tpu_custom_call.1} parent=103 // pred_check_branch
                %443 = sbr.rel (0) target = $region119
              $region118: #{tpu_custom_call.1} parent=103 // pred_region
                loop: start=0, step=1, limit=1
                $region120: #{tpu_custom_call.1} parent=118 // loop_pre_header
                  _
                $region121: #{tpu_custom_call.1} parent=118 // loop_header
                  %s445 = sphi 0, %s449
                  %p446 = scmp.ge.s32.totalorder %s445, 1
                  %s450 = sphi %s418, %s418
                  %s451 = sphi %s410, %s410
                $region122: #{tpu_custom_call.1} parent=118 // loop_header_branch
                  %448 = sbr.rel (%p446) target = $region126
                $region123: #{tpu_custom_call.1} parent=118 // loop_body
                  %v452 = vld [vmem:[%s450] sm:$0xff]
                  %453 = vst [vmem:[%s451] sm:$0xff] %v452
                  %v454 = vld [vmem:[%s450 + $0x8] sm:$0xff]
                  %455 = vst [vmem:[%s451 + $0x8] sm:$0xff] %v454
                  %v456 = vld [vmem:[%s450 + $0x100] sm:$0xff]
                  %457 = vst [vmem:[%s451 + $0x10] sm:$0xff] %v456
                  %v458 = vld [vmem:[%s450 + $0x108] sm:$0xff]
                  %459 = vst [vmem:[%s451 + $0x18] sm:$0xff] %v458
                $region124: #{tpu_custom_call.1} parent=118 // loop_footer
                  %s449 = sadd.s32 1, %s445
                $region125: #{tpu_custom_call.1} parent=118 // loop_footer_branch
                  %444 = sbr.rel target = $region121
                $region126: #{tpu_custom_call.1} parent=118 // loop_exit
                  _
              $region119: #{tpu_custom_call.1} parent=103 // pred_fallthru
                _
              // Predicated region
              $region127: #{tpu_custom_call.1} parent=103 // pred_check
                _
              $region128: #{tpu_custom_call.1} parent=103 // pred_check_branch
                %461 = sbr.rel target = $region130
              $region129: #{tpu_custom_call.1} parent=103 // pred_region
                _
              $region130: #{tpu_custom_call.1} parent=103 // pred_fallthru
                _
            $region104: #{tpu_custom_call.1} parent=99 // pred_fallthru
              _
            // Predicated region
            $region105: #{tpu_custom_call.1} parent=99 // pred_check
              _
            $region106: #{tpu_custom_call.1} parent=99 // pred_check_branch
              %424 = sbr.rel target = $region108
            $region107: #{tpu_custom_call.1} parent=99 // pred_region
              loop: start=0, step=1, limit=1
              $region109: #{tpu_custom_call.1} parent=107 // loop_pre_header
                _
              $region110: #{tpu_custom_call.1} parent=107 // loop_header
                %s427 = sphi 0, %s431
                %p428 = scmp.ge.s32.totalorder %s427, 1
                %s432 = sphi %s418, %s418
                %s433 = sphi %s410, %s410
              $region111: #{tpu_custom_call.1} parent=107 // loop_header_branch
                %430 = sbr.rel (%p428) target = $region115
              $region112: #{tpu_custom_call.1} parent=107 // loop_body
                %v434 = vld [vmem:[%s432] sm:$0xff]
                %435 = vst [vmem:[%s433] sm:$0xff] %v434
                %v436 = vld [vmem:[%s432 + $0x8] sm:$0xff]
                %437 = vst [vmem:[%s433 + $0x8] sm:$0xff] %v436
                %v438 = vld [vmem:[%s432 + $0x100] sm:$0xff]
                %439 = vst [vmem:[%s433 + $0x10] sm:$0xff] %v438
                %v440 = vld [vmem:[%s432 + $0x108] sm:$0xff]
                %441 = vst [vmem:[%s433 + $0x18] sm:$0xff] %v440
              $region113: #{tpu_custom_call.1} parent=107 // loop_footer
                %s431 = sadd.s32 1, %s427
              $region114: #{tpu_custom_call.1} parent=107 // loop_footer_branch
                %426 = sbr.rel target = $region110
              $region115: #{tpu_custom_call.1} parent=107 // loop_exit
                _
            $region108: #{tpu_custom_call.1} parent=99 // pred_fallthru
              _
          $region100: #{tpu_custom_call.1} parent=95 // pred_fallthru
            _
          %462 = vnop
        $region96: #{tpu_custom_call.1} parent=15 // pred_fallthru
          _
      $region16: #{tpu_custom_call.1} parent=5 // pred_fallthru
        _
      %p463 = scmp.le.s32.totalorder 1, %s9
      %p464 = scmp.lt.s32.totalorder %s9, 5
      %p465 = pnand %p463, %p464
      %p466 = pneg %p465
      // Predicated region
      $region131: #{tpu_custom_call.1} parent=5 // pred_check
        _
      $region132: #{tpu_custom_call.1} parent=5 // pred_check_branch
        %468 = sbr.rel (%p465) target = $region134
      $region133: #{tpu_custom_call.1} parent=5 // pred_region
        %s469 = ssub.s32 %s9, 1
        %s470 = sand.u32 %s43, 1
        %s471 = sand.u32 %s43, 1
        %s472 = smul.addr %s471, 256
        %s473 = scalar_lea.vmem [#allocation5], %s472
        // Predicated region
        $region135: #{tpu_custom_call.1} parent=133 // pred_check
          %p474 = pneg %p56
        $region136: #{tpu_custom_call.1} parent=133 // pred_check_branch
          %476 = sbr.rel (%p474) target = $region138
        $region137: #{tpu_custom_call.1} parent=133 // pred_region
          _
        $region138: #{tpu_custom_call.1} parent=133 // pred_fallthru
          _
        %s477 = sand.u32 %s79, 1
        %s478 = sand.u32 %s79, 1
        %s479 = smul.addr %s478, 32
        %s480 = scalar_lea.vmem [#allocation6], %s479
        // Predicated region
        $region139: #{tpu_custom_call.1} parent=133 // pred_check
          %p481 = pneg %p92
        $region140: #{tpu_custom_call.1} parent=133 // pred_check_branch
          %483 = sbr.rel (%p481) target = $region142
        $region141: #{tpu_custom_call.1} parent=133 // pred_region
          _
        $region142: #{tpu_custom_call.1} parent=133 // pred_fallthru
          _
        %s484 = sand.u32 %s115, 1
        %s485 = sand.u32 %s115, 1
        %s486 = smul.addr %s485, 32
        %s487 = scalar_lea.vmem [#allocation7], %s486
        // Predicated region
        $region143: #{tpu_custom_call.1} parent=133 // pred_check
          %p488 = pneg %p128
        $region144: #{tpu_custom_call.1} parent=133 // pred_check_branch
          %490 = sbr.rel (%p488) target = $region146
        $region145: #{tpu_custom_call.1} parent=133 // pred_region
          _
        $region146: #{tpu_custom_call.1} parent=133 // pred_fallthru
          _
        %s491 = sand.u32 %s43, 1
        %s492 = sand.u32 %s43, 1
        %s493 = smul.addr %s492, 256
        %s494 = scalar_lea.vmem [#allocation5], %s493
        %p495 = pneg %p56
        %p496 = pneg %p53
        %s497 = sand.u32 %s79, 1
        %s498 = sand.u32 %s79, 1
        %s499 = smul.addr %s498, 32
        %s500 = scalar_lea.vmem [#allocation6], %s499
        %p501 = pneg %p92
        %p502 = pneg %p89
        %s503 = sand.u32 %s115, 1
        %s504 = sand.u32 %s115, 1
        %s505 = smul.addr %s504, 32
        %s506 = scalar_lea.vmem [#allocation7], %s505
        %p507 = pneg %p128
        %p508 = pneg %p125
        %p509 = pneg %p158
        %p510 = pneg %p155
        %s511 = sand.u32 %s145, 1
        %s512 = sand.u32 %s145, 1
        %s513 = smul.addr %s512, 256
        %s514 = scalar_lea.vmem [#allocation8], %s513
        %s515 = smul.u32 8, %s21
        %s516 = smul.u32 %s21, 8
        %s517 = ssub.s32 %s516, 1
        %p518 = scmp.gt.s32.totalorder %s517, 0
        %s519 = scalar_select %p518, %s517, 0
        %s520 = smul.u32 %s21, 8
        %s521 = sadd.s32 %s520, 8
        %p522 = scmp.lt.s32.totalorder %s521, 15
        %s523 = scalar_select %p522, %s521, 15
        %s524 = smul.u32 %s21, %s20
        %s525 = smul.u32 8, %s524
        %v526 = vld [vmem:[%s473] sm:$0xff]
        %v527 = vld [vmem:[%s473 + $0x8] sm:$0xff]
        %v528 = vld [vmem:[%s473 + $0x10] sm:$0xff]
        %v529 = vld [vmem:[%s473 + $0x18] sm:$0xff]
        %v530 = vld [vmem:[%s473 + $0x20] sm:$0xff]
        %v531 = vld [vmem:[%s473 + $0x28] sm:$0xff]
        %v532 = vld [vmem:[%s473 + $0x30] sm:$0xff]
        %v533 = vld [vmem:[%s473 + $0x38] sm:$0xff]
        %v534 = vld [vmem:[%s473 + $0x40] sm:$0xff]
        %v535 = vld [vmem:[%s473 + $0x48] sm:$0xff]
        %v536 = vld [vmem:[%s473 + $0x50] sm:$0xff]
        %v537 = vld [vmem:[%s473 + $0x58] sm:$0xff]
        %v538 = vld [vmem:[%s473 + $0x60] sm:$0xff]
        %v539 = vld [vmem:[%s473 + $0x68] sm:$0xff]
        %v540 = vld [vmem:[%s473 + $0x70] sm:$0xff]
        %v541 = vld [vmem:[%s473 + $0x78] sm:$0xff]
        %v542 = vld [vmem:[%s473 + $0x80] sm:$0xff]
        %v543 = vld [vmem:[%s473 + $0x88] sm:$0xff]
        %v544 = vld [vmem:[%s473 + $0x90] sm:$0xff]
        %v545 = vld [vmem:[%s473 + $0x98] sm:$0xff]
        %v546 = vld [vmem:[%s473 + $0xa0] sm:$0xff]
        %v547 = vld [vmem:[%s473 + $0xa8] sm:$0xff]
        %v548 = vld [vmem:[%s473 + $0xb0] sm:$0xff]
        %v549 = vld [vmem:[%s473 + $0xb8] sm:$0xff]
        %v550 = vld [vmem:[%s473 + $0xc0] sm:$0xff]
        %v551 = vld [vmem:[%s473 + $0xc8] sm:$0xff]
        %v552 = vld [vmem:[%s473 + $0xd0] sm:$0xff]
        %v553 = vld [vmem:[%s473 + $0xd8] sm:$0xff]
        %v554 = vld [vmem:[%s473 + $0xe0] sm:$0xff]
        %v555 = vld [vmem:[%s473 + $0xe8] sm:$0xff]
        %v556 = vld [vmem:[%s473 + $0xf0] sm:$0xff]
        %v557 = vld [vmem:[%s473 + $0xf8] sm:$0xff]
        %vm590 = vcmask 1046528
        %v591 = vrot.slane %v526, 1
        %v592 = vrot.slane %v527, 1
        %v593 = vsel %vm590, %v591, %v592
        %v594 = vrot.slane %v528, 1
        %v595 = vrot.slane %v529, 1
        %v596 = vsel %vm590, %v594, %v595
        %v597 = vrot.slane %v530, 1
        %v598 = vrot.slane %v531, 1
        %v599 = vsel %vm590, %v597, %v598
        %v600 = vrot.slane %v532, 1
        %v601 = vrot.slane %v533, 1
        %v602 = vsel %vm590, %v600, %v601
        %v603 = vrot.slane %v534, 1
        %v604 = vrot.slane %v535, 1
        %v605 = vsel %vm590, %v603, %v604
        %v606 = vrot.slane %v536, 1
        %v607 = vrot.slane %v537, 1
        %v608 = vsel %vm590, %v606, %v607
        %v609 = vrot.slane %v538, 1
        %v610 = vrot.slane %v539, 1
        %v611 = vsel %vm590, %v609, %v610
        %v612 = vrot.slane %v540, 1
        %v613 = vrot.slane %v541, 1
        %v614 = vsel %vm590, %v612, %v613
        %v615 = vrot.slane %v542, 1
        %v616 = vrot.slane %v543, 1
        %v617 = vsel %vm590, %v615, %v616
        %v618 = vrot.slane %v544, 1
        %v619 = vrot.slane %v545, 1
        %v620 = vsel %vm590, %v618, %v619
        %v621 = vrot.slane %v546, 1
        %v622 = vrot.slane %v547, 1
        %v623 = vsel %vm590, %v621, %v622
        %v624 = vrot.slane %v548, 1
        %v625 = vrot.slane %v549, 1
        %v626 = vsel %vm590, %v624, %v625
        %v627 = vrot.slane %v550, 1
        %v628 = vrot.slane %v551, 1
        %v629 = vsel %vm590, %v627, %v628
        %v630 = vrot.slane %v552, 1
        %v631 = vrot.slane %v553, 1
        %v632 = vsel %vm590, %v630, %v631
        %v633 = vrot.slane %v554, 1
        %v634 = vrot.slane %v555, 1
        %v635 = vsel %vm590, %v633, %v634
        %v636 = vrot.slane %v556, 1
        %v637 = vrot.slane %v557, 1
        %v638 = vsel %vm590, %v636, %v637
        %v671 = vadd.f32 %v526, %v593
        %v672 = vadd.f32 %v527, %v592
        %v673 = vadd.f32 %v528, %v596
        %v674 = vadd.f32 %v529, %v595
        %v675 = vadd.f32 %v530, %v599
        %v676 = vadd.f32 %v531, %v598
        %v677 = vadd.f32 %v532, %v602
        %v678 = vadd.f32 %v533, %v601
        %v679 = vadd.f32 %v534, %v605
        %v680 = vadd.f32 %v535, %v604
        %v681 = vadd.f32 %v536, %v608
        %v682 = vadd.f32 %v537, %v607
        %v683 = vadd.f32 %v538, %v611
        %v684 = vadd.f32 %v539, %v610
        %v685 = vadd.f32 %v540, %v614
        %v686 = vadd.f32 %v541, %v613
        %v687 = vadd.f32 %v542, %v617
        %v688 = vadd.f32 %v543, %v616
        %v689 = vadd.f32 %v544, %v620
        %v690 = vadd.f32 %v545, %v619
        %v691 = vadd.f32 %v546, %v623
        %v692 = vadd.f32 %v547, %v622
        %v693 = vadd.f32 %v548, %v626
        %v694 = vadd.f32 %v549, %v625
        %v695 = vadd.f32 %v550, %v629
        %v696 = vadd.f32 %v551, %v628
        %v697 = vadd.f32 %v552, %v632
        %v698 = vadd.f32 %v553, %v631
        %v699 = vadd.f32 %v554, %v635
        %v700 = vadd.f32 %v555, %v634
        %v701 = vadd.f32 %v556, %v638
        %v702 = vadd.f32 %v557, %v637
        %vm703 = vcmask 1045504
        %v704 = vrot.slane %v526, 2
        %v705 = vrot.slane %v527, 2
        %v706 = vsel %vm703, %v704, %v705
        %v707 = vrot.slane %v528, 2
        %v708 = vrot.slane %v529, 2
        %v709 = vsel %vm703, %v707, %v708
        %v710 = vrot.slane %v530, 2
        %v711 = vrot.slane %v531, 2
        %v712 = vsel %vm703, %v710, %v711
        %v713 = vrot.slane %v532, 2
        %v714 = vrot.slane %v533, 2
        %v715 = vsel %vm703, %v713, %v714
        %v716 = vrot.slane %v534, 2
        %v717 = vrot.slane %v535, 2
        %v718 = vsel %vm703, %v716, %v717
        %v719 = vrot.slane %v536, 2
        %v720 = vrot.slane %v537, 2
        %v721 = vsel %vm703, %v719, %v720
        %v722 = vrot.slane %v538, 2
        %v723 = vrot.slane %v539, 2
        %v724 = vsel %vm703, %v722, %v723
        %v725 = vrot.slane %v540, 2
        %v726 = vrot.slane %v541, 2
        %v727 = vsel %vm703, %v725, %v726
        %v728 = vrot.slane %v542, 2
        %v729 = vrot.slane %v543, 2
        %v730 = vsel %vm703, %v728, %v729
        %v731 = vrot.slane %v544, 2
        %v732 = vrot.slane %v545, 2
        %v733 = vsel %vm703, %v731, %v732
        %v734 = vrot.slane %v546, 2
        %v735 = vrot.slane %v547, 2
        %v736 = vsel %vm703, %v734, %v735
        %v737 = vrot.slane %v548, 2
        %v738 = vrot.slane %v549, 2
        %v739 = vsel %vm703, %v737, %v738
        %v740 = vrot.slane %v550, 2
        %v741 = vrot.slane %v551, 2
        %v742 = vsel %vm703, %v740, %v741
        %v743 = vrot.slane %v552, 2
        %v744 = vrot.slane %v553, 2
        %v745 = vsel %vm703, %v743, %v744
        %v746 = vrot.slane %v554, 2
        %v747 = vrot.slane %v555, 2
        %v748 = vsel %vm703, %v746, %v747
        %v749 = vrot.slane %v556, 2
        %v750 = vrot.slane %v557, 2
        %v751 = vsel %vm703, %v749, %v750
        %v784 = vadd.f32 %v671, %v706
        %v785 = vadd.f32 %v672, %v705
        %v786 = vadd.f32 %v673, %v709
        %v787 = vadd.f32 %v674, %v708
        %v788 = vadd.f32 %v675, %v712
        %v789 = vadd.f32 %v676, %v711
        %v790 = vadd.f32 %v677, %v715
        %v791 = vadd.f32 %v678, %v714
        %v792 = vadd.f32 %v679, %v718
        %v793 = vadd.f32 %v680, %v717
        %v794 = vadd.f32 %v681, %v721
        %v795 = vadd.f32 %v682, %v720
        %v796 = vadd.f32 %v683, %v724
        %v797 = vadd.f32 %v684, %v723
        %v798 = vadd.f32 %v685, %v727
        %v799 = vadd.f32 %v686, %v726
        %v800 = vadd.f32 %v687, %v730
        %v801 = vadd.f32 %v688, %v729
        %v802 = vadd.f32 %v689, %v733
        %v803 = vadd.f32 %v690, %v732
        %v804 = vadd.f32 %v691, %v736
        %v805 = vadd.f32 %v692, %v735
        %v806 = vadd.f32 %v693, %v739
        %v807 = vadd.f32 %v694, %v738
        %v808 = vadd.f32 %v695, %v742
        %v809 = vadd.f32 %v696, %v741
        %v810 = vadd.f32 %v697, %v745
        %v811 = vadd.f32 %v698, %v744
        %v812 = vadd.f32 %v699, %v748
        %v813 = vadd.f32 %v700, %v747
        %v814 = vadd.f32 %v701, %v751
        %v815 = vadd.f32 %v702, %v750
        %s816 = scalar_lea.vmem [#allocation2], 16
        %vm817 = vcmask 31744
        %818 = vst.msk [vmem:[%s816 + $0x1] sm:$0xff] %vm817, %v784
        %vm819 = vcmask 29696
        %820 = vst.msk [vmem:[%s816 + $0x9] sm:$0x3f] %vm819, %v785
        %821 = vst.msk [vmem:[%s816 + $0x11] sm:$0xff] %vm817, %v786
        %822 = vst.msk [vmem:[%s816 + $0x19] sm:$0x3f] %vm819, %v787
        %823 = vst.msk [vmem:[%s816 + $0x21] sm:$0xff] %vm817, %v788
        %824 = vst.msk [vmem:[%s816 + $0x29] sm:$0x3f] %vm819, %v789
        %825 = vst.msk [vmem:[%s816 + $0x31] sm:$0xff] %vm817, %v790
        %826 = vst.msk [vmem:[%s816 + $0x39] sm:$0x3f] %vm819, %v791
        %827 = vst.msk [vmem:[%s816 + $0x41] sm:$0xff] %vm817, %v792
        %828 = vst.msk [vmem:[%s816 + $0x49] sm:$0x3f] %vm819, %v793
        %829 = vst.msk [vmem:[%s816 + $0x51] sm:$0xff] %vm817, %v794
        %830 = vst.msk [vmem:[%s816 + $0x59] sm:$0x3f] %vm819, %v795
        %831 = vst.msk [vmem:[%s816 + $0x61] sm:$0xff] %vm817, %v796
        %832 = vst.msk [vmem:[%s816 + $0x69] sm:$0x3f] %vm819, %v797
        %833 = vst.msk [vmem:[%s816 + $0x71] sm:$0xff] %vm817, %v798
        %834 = vst.msk [vmem:[%s816 + $0x79] sm:$0x3f] %vm819, %v799
        %835 = vst.msk [vmem:[%s816 + $0xa1] sm:$0xff] %vm817, %v800
        %836 = vst.msk [vmem:[%s816 + $0xa9] sm:$0x3f] %vm819, %v801
        %837 = vst.msk [vmem:[%s816 + $0xb1] sm:$0xff] %vm817, %v802
        %838 = vst.msk [vmem:[%s816 + $0xb9] sm:$0x3f] %vm819, %v803
        %839 = vst.msk [vmem:[%s816 + $0xc1] sm:$0xff] %vm817, %v804
        %840 = vst.msk [vmem:[%s816 + $0xc9] sm:$0x3f] %vm819, %v805
        %841 = vst.msk [vmem:[%s816 + $0xd1] sm:$0xff] %vm817, %v806
        %842 = vst.msk [vmem:[%s816 + $0xd9] sm:$0x3f] %vm819, %v807
        %843 = vst.msk [vmem:[%s816 + $0xe1] sm:$0xff] %vm817, %v808
        %844 = vst.msk [vmem:[%s816 + $0xe9] sm:$0x3f] %vm819, %v809
        %845 = vst.msk [vmem:[%s816 + $0xf1] sm:$0xff] %vm817, %v810
        %846 = vst.msk [vmem:[%s816 + $0xf9] sm:$0x3f] %vm819, %v811
        %847 = vst.msk [vmem:[%s816 + $0x101] sm:$0xff] %vm817, %v812
        %848 = vst.msk [vmem:[%s816 + $0x109] sm:$0x3f] %vm819, %v813
        %849 = vst.msk [vmem:[%s816 + $0x111] sm:$0xff] %vm817, %v814
        %850 = vst.msk [vmem:[%s816 + $0x119] sm:$0x3f] %vm819, %v815
        %v867 = vadd.f32 %v526, %v591
        %v868 = vadd.f32 %v528, %v594
        %v869 = vadd.f32 %v530, %v597
        %v870 = vadd.f32 %v532, %v600
        %v871 = vadd.f32 %v534, %v603
        %v872 = vadd.f32 %v536, %v606
        %v873 = vadd.f32 %v538, %v609
        %v874 = vadd.f32 %v540, %v612
        %v875 = vadd.f32 %v542, %v615
        %v876 = vadd.f32 %v544, %v618
        %v877 = vadd.f32 %v546, %v621
        %v878 = vadd.f32 %v548, %v624
        %v879 = vadd.f32 %v550, %v627
        %v880 = vadd.f32 %v552, %v630
        %v881 = vadd.f32 %v554, %v633
        %v882 = vadd.f32 %v556, %v636
        %v883 = vmul.f32 %v867, 1.5
        %v884 = vmul.f32 %v868, 1.5
        %v885 = vmul.f32 %v869, 1.5
        %v886 = vmul.f32 %v870, 1.5
        %v887 = vmul.f32 %v871, 1.5
        %v888 = vmul.f32 %v872, 1.5
        %v889 = vmul.f32 %v873, 1.5
        %v890 = vmul.f32 %v874, 1.5
        %v891 = vmul.f32 %v875, 1.5
        %v892 = vmul.f32 %v876, 1.5
        %v893 = vmul.f32 %v877, 1.5
        %v894 = vmul.f32 %v878, 1.5
        %v895 = vmul.f32 %v879, 1.5
        %v896 = vmul.f32 %v880, 1.5
        %v897 = vmul.f32 %v881, 1.5
        %v898 = vmul.f32 %v882, 1.5
        %vm899 = vcmask 24576
        %900 = vst.msk [vmem:[%s816] sm:$0x1] %vm899, %v883
        %901 = vst.msk [vmem:[%s816 + $0x10] sm:$0x1] %vm899, %v884
        %902 = vst.msk [vmem:[%s816 + $0x20] sm:$0x1] %vm899, %v885
        %903 = vst.msk [vmem:[%s816 + $0x30] sm:$0x1] %vm899, %v886
        %904 = vst.msk [vmem:[%s816 + $0x40] sm:$0x1] %vm899, %v887
        %905 = vst.msk [vmem:[%s816 + $0x50] sm:$0x1] %vm899, %v888
        %906 = vst.msk [vmem:[%s816 + $0x60] sm:$0x1] %vm899, %v889
        %907 = vst.msk [vmem:[%s816 + $0x70] sm:$0x1] %vm899, %v890
        %908 = vst.msk [vmem:[%s816 + $0xa0] sm:$0x1] %vm899, %v891
        %909 = vst.msk [vmem:[%s816 + $0xb0] sm:$0x1] %vm899, %v892
        %910 = vst.msk [vmem:[%s816 + $0xc0] sm:$0x1] %vm899, %v893
        %911 = vst.msk [vmem:[%s816 + $0xd0] sm:$0x1] %vm899, %v894
        %912 = vst.msk [vmem:[%s816 + $0xe0] sm:$0x1] %vm899, %v895
        %913 = vst.msk [vmem:[%s816 + $0xf0] sm:$0x1] %vm899, %v896
        %914 = vst.msk [vmem:[%s816 + $0x100] sm:$0x1] %vm899, %v897
        %915 = vst.msk [vmem:[%s816 + $0x110] sm:$0x1] %vm899, %v898
        %v916 = vmul.f32 %v672, 1.5
        %v917 = vmul.f32 %v674, 1.5
        %v918 = vmul.f32 %v676, 1.5
        %v919 = vmul.f32 %v678, 1.5
        %v920 = vmul.f32 %v680, 1.5
        %v921 = vmul.f32 %v682, 1.5
        %v922 = vmul.f32 %v684, 1.5
        %v923 = vmul.f32 %v686, 1.5
        %v924 = vmul.f32 %v688, 1.5
        %v925 = vmul.f32 %v690, 1.5
        %v926 = vmul.f32 %v692, 1.5
        %v927 = vmul.f32 %v694, 1.5
        %v928 = vmul.f32 %v696, 1.5
        %v929 = vmul.f32 %v698, 1.5
        %v930 = vmul.f32 %v700, 1.5
        %v931 = vmul.f32 %v702, 1.5
        %vm932 = vcmask 30726
        %933 = vst.msk [vmem:[%s816 + $0x9] sm:$0x40] %vm932, %v916
        %934 = vst.msk [vmem:[%s816 + $0x19] sm:$0x40] %vm932, %v917
        %935 = vst.msk [vmem:[%s816 + $0x29] sm:$0x40] %vm932, %v918
        %936 = vst.msk [vmem:[%s816 + $0x39] sm:$0x40] %vm932, %v919
        %937 = vst.msk [vmem:[%s816 + $0x49] sm:$0x40] %vm932, %v920
        %938 = vst.msk [vmem:[%s816 + $0x59] sm:$0x40] %vm932, %v921
        %939 = vst.msk [vmem:[%s816 + $0x69] sm:$0x40] %vm932, %v922
        %940 = vst.msk [vmem:[%s816 + $0x79] sm:$0x40] %vm932, %v923
        %941 = vst.msk [vmem:[%s816 + $0xa9] sm:$0x40] %vm932, %v924
        %942 = vst.msk [vmem:[%s816 + $0xb9] sm:$0x40] %vm932, %v925
        %943 = vst.msk [vmem:[%s816 + $0xc9] sm:$0x40] %vm932, %v926
        %944 = vst.msk [vmem:[%s816 + $0xd9] sm:$0x40] %vm932, %v927
        %945 = vst.msk [vmem:[%s816 + $0xe9] sm:$0x40] %vm932, %v928
        %946 = vst.msk [vmem:[%s816 + $0xf9] sm:$0x40] %vm932, %v929
        %947 = vst.msk [vmem:[%s816 + $0x109] sm:$0x40] %vm932, %v930
        %948 = vst.msk [vmem:[%s816 + $0x119] sm:$0x40] %vm932, %v931
        %p949 = scmp.eq.s32.totalorder %s21, 0
        // Predicated region
        $region147: #{tpu_custom_call.1} parent=133 // pred_check
          %p950 = pneg %p949
        $region148: #{tpu_custom_call.1} parent=133 // pred_check_branch
          %952 = sbr.rel (%p950) target = $region150
        $region149: #{tpu_custom_call.1} parent=133 // pred_region
          %v953 = vld [vmem:[%s816] sm:$0xff]
          %v954 = vld [vmem:[%s816 + $0x8] sm:$0xff]
          %v955 = vld [vmem:[%s816 + $0xa0] sm:$0xff]
          %v956 = vld [vmem:[%s816 + $0xa8] sm:$0xff]
          %s957 = scalar_lea.vmem [#allocation2], 32
          %v958 = vld [vmem:[%s957] sm:$0xff]
          %v959 = vld [vmem:[%s957 + $0x8] sm:$0xff]
          %v960 = vld [vmem:[%s957 + $0xa0] sm:$0xff]
          %v961 = vld [vmem:[%s957 + $0xa8] sm:$0xff]
          %v962 = vadd.f32 %v953, %v958
          %v963 = vadd.f32 %v954, %v959
          %v964 = vadd.f32 %v955, %v960
          %v965 = vadd.f32 %v956, %v961
          %v966 = vmul.f32 %v962, 0.5
          %v967 = vmul.f32 %v963, 0.5
          %v968 = vmul.f32 %v964, 0.5
          %v969 = vmul.f32 %v965, 0.5
          %970 = vst.msk [vmem:[#allocation2] sm:$0xff] %vm817, %v966
          %971 = vst.msk [vmem:[#allocation2 + $0x8] sm:$0xff] %vm817, %v967
          %972 = vst.msk [vmem:[#allocation2 + $0xa0] sm:$0xff] %vm817, %v968
          %973 = vst.msk [vmem:[#allocation2 + $0xa8] sm:$0xff] %vm817, %v969
        $region150: #{tpu_custom_call.1} parent=133 // pred_fallthru
          _
        %p974 = scmp.gt.s32.totalorder %s21, 0
        // Predicated region
        $region151: #{tpu_custom_call.1} parent=133 // pred_check
          %p975 = pneg %p974
        $region152: #{tpu_custom_call.1} parent=133 // pred_check_branch
          %977 = sbr.rel (%p975) target = $region154
        $region153: #{tpu_custom_call.1} parent=133 // pred_region
          %v978 = vld [vmem:[%s480] sm:$0xff]
          %v979 = vld [vmem:[%s480 + $0x8] sm:$0xff]
          %v980 = vld [vmem:[%s480 + $0x10] sm:$0xff]
          %v981 = vld [vmem:[%s480 + $0x18] sm:$0xff]
          %v986 = vrot.slane %v978, 1
          %v987 = vrot.slane %v979, 1
          %v988 = vsel %vm590, %v986, %v987
          %v989 = vrot.slane %v980, 1
          %v990 = vrot.slane %v981, 1
          %v991 = vsel %vm590, %v989, %v990
          %v996 = vadd.f32 %v978, %v988
          %v997 = vadd.f32 %v979, %v987
          %v998 = vadd.f32 %v980, %v991
          %v999 = vadd.f32 %v981, %v990
          %v1000 = vrot.slane %v978, 2
          %v1001 = vrot.slane %v979, 2
          %v1002 = vsel %vm703, %v1000, %v1001
          %v1003 = vrot.slane %v980, 2
          %v1004 = vrot.slane %v981, 2
          %v1005 = vsel %vm703, %v1003, %v1004
          %v1010 = vadd.f32 %v996, %v1002
          %v1011 = vadd.f32 %v997, %v1001
          %v1012 = vadd.f32 %v998, %v1005
          %v1013 = vadd.f32 %v999, %v1004
          %1014 = vst.msk [vmem:[#allocation2 + $0x1] sm:$0xff] %vm817, %v1010
          %1015 = vst.msk [vmem:[#allocation2 + $0x9] sm:$0x3f] %vm819, %v1011
          %1016 = vst.msk [vmem:[#allocation2 + $0xa1] sm:$0xff] %vm817, %v1012
          %1017 = vst.msk [vmem:[#allocation2 + $0xa9] sm:$0x3f] %vm819, %v1013
          %v1020 = vadd.f32 %v978, %v986
          %v1021 = vadd.f32 %v980, %v989
          %v1022 = vmul.f32 %v1020, 1.5
          %v1023 = vmul.f32 %v1021, 1.5
          %1024 = vst.msk [vmem:[#allocation2] sm:$0x1] %vm899, %v1022
          %1025 = vst.msk [vmem:[#allocation2 + $0xa0] sm:$0x1] %vm899, %v1023
          %v1026 = vmul.f32 %v997, 1.5
          %v1027 = vmul.f32 %v999, 1.5
          %1028 = vst.msk [vmem:[#allocation2 + $0x9] sm:$0x40] %vm932, %v1026
          %1029 = vst.msk [vmem:[#allocation2 + $0xa9] sm:$0x40] %vm932, %v1027
        $region154: #{tpu_custom_call.1} parent=133 // pred_fallthru
          _
        %p1030 = scmp.eq.s32.totalorder %s21, 1
        // Predicated region
        $region155: #{tpu_custom_call.1} parent=133 // pred_check
          %p1031 = pneg %p1030
        $region156: #{tpu_custom_call.1} parent=133 // pred_check_branch
          %1033 = sbr.rel (%p1031) target = $region158
        $region157: #{tpu_custom_call.1} parent=133 // pred_region
          %s1034 = scalar_lea.vmem [#allocation2], 112
          %v1035 = vld [vmem:[%s1034] sm:$0xff]
          %v1036 = vld [vmem:[%s1034 + $0x8] sm:$0xff]
          %v1037 = vld [vmem:[%s1034 + $0xa0] sm:$0xff]
          %v1038 = vld [vmem:[%s1034 + $0xa8] sm:$0xff]
          %s1039 = scalar_lea.vmem [#allocation2], 128
          %v1040 = vld [vmem:[%s1039] sm:$0xff]
          %v1041 = vld [vmem:[%s1039 + $0x8] sm:$0xff]
          %v1042 = vld [vmem:[%s1039 + $0xa0] sm:$0xff]
          %v1043 = vld [vmem:[%s1039 + $0xa8] sm:$0xff]
          %v1044 = vadd.f32 %v1035, %v1040
          %v1045 = vadd.f32 %v1036, %v1041
          %v1046 = vadd.f32 %v1037, %v1042
          %v1047 = vadd.f32 %v1038, %v1043
          %v1048 = vmul.f32 %v1044, 0.5
          %v1049 = vmul.f32 %v1045, 0.5
          %v1050 = vmul.f32 %v1046, 0.5
          %v1051 = vmul.f32 %v1047, 0.5
          %s1052 = scalar_lea.vmem [#allocation2], 144
          %1053 = vst.msk [vmem:[%s1052] sm:$0xff] %vm817, %v1048
          %1054 = vst.msk [vmem:[%s1052 + $0x8] sm:$0xff] %vm817, %v1049
          %1055 = vst.msk [vmem:[%s1052 + $0xa0] sm:$0xff] %vm817, %v1050
          %1056 = vst.msk [vmem:[%s1052 + $0xa8] sm:$0xff] %vm817, %v1051
        $region158: #{tpu_custom_call.1} parent=133 // pred_fallthru
          _
        %p1057 = scmp.lt.s32.totalorder %s21, 1
        // Predicated region
        $region159: #{tpu_custom_call.1} parent=133 // pred_check
          %p1058 = pneg %p1057
        $region160: #{tpu_custom_call.1} parent=133 // pred_check_branch
          %1060 = sbr.rel (%p1058) target = $region162
        $region161: #{tpu_custom_call.1} parent=133 // pred_region
          %v1061 = vld [vmem:[%s487] sm:$0xff]
          %v1062 = vld [vmem:[%s487 + $0x8] sm:$0xff]
          %v1063 = vld [vmem:[%s487 + $0x10] sm:$0xff]
          %v1064 = vld [vmem:[%s487 + $0x18] sm:$0xff]
          %v1069 = vrot.slane %v1061, 1
          %v1070 = vrot.slane %v1062, 1
          %v1071 = vsel %vm590, %v1069, %v1070
          %v1072 = vrot.slane %v1063, 1
          %v1073 = vrot.slane %v1064, 1
          %v1074 = vsel %vm590, %v1072, %v1073
          %v1079 = vadd.f32 %v1061, %v1071
          %v1080 = vadd.f32 %v1062, %v1070
          %v1081 = vadd.f32 %v1063, %v1074
          %v1082 = vadd.f32 %v1064, %v1073
          %v1083 = vrot.slane %v1061, 2
          %v1084 = vrot.slane %v1062, 2
          %v1085 = vsel %vm703, %v1083, %v1084
          %v1086 = vrot.slane %v1063, 2
          %v1087 = vrot.slane %v1064, 2
          %v1088 = vsel %vm703, %v1086, %v1087
          %v1093 = vadd.f32 %v1079, %v1085
          %v1094 = vadd.f32 %v1080, %v1084
          %v1095 = vadd.f32 %v1081, %v1088
          %v1096 = vadd.f32 %v1082, %v1087
          %s1097 = scalar_lea.vmem [#allocation2], 144
          %1098 = vst.msk [vmem:[%s1097 + $0x1] sm:$0xff] %vm817, %v1093
          %1099 = vst.msk [vmem:[%s1097 + $0x9] sm:$0x3f] %vm819, %v1094
          %1100 = vst.msk [vmem:[%s1097 + $0xa1] sm:$0xff] %vm817, %v1095
          %1101 = vst.msk [vmem:[%s1097 + $0xa9] sm:$0x3f] %vm819, %v1096
          %v1104 = vadd.f32 %v1061, %v1069
          %v1105 = vadd.f32 %v1063, %v1072
          %v1106 = vmul.f32 %v1104, 1.5
          %v1107 = vmul.f32 %v1105, 1.5
          %1108 = vst.msk [vmem:[%s1097] sm:$0x1] %vm899, %v1106
          %1109 = vst.msk [vmem:[%s1097 + $0xa0] sm:$0x1] %vm899, %v1107
          %v1110 = vmul.f32 %v1080, 1.5
          %v1111 = vmul.f32 %v1082, 1.5
          %1112 = vst.msk [vmem:[%s1097 + $0x9] sm:$0x40] %vm932, %v1110
          %1113 = vst.msk [vmem:[%s1097 + $0xa9] sm:$0x40] %vm932, %v1111
        $region162: #{tpu_custom_call.1} parent=133 // pred_fallthru
          _
        %v1114 = vld [vmem:[#allocation2] sm:$0xff]
        %v1115 = vld [vmem:[#allocation2 + $0x8] sm:$0xff]
        %v1116 = vld [vmem:[#allocation2 + $0x10] sm:$0xff]
        %v1117 = vld [vmem:[#allocation2 + $0x18] sm:$0xff]
        %v1118 = vld [vmem:[#allocation2 + $0x20] sm:$0xff]
        %v1119 = vld [vmem:[#allocation2 + $0x28] sm:$0xff]
        %v1120 = vld [vmem:[#allocation2 + $0x30] sm:$0xff]
        %v1121 = vld [vmem:[#allocation2 + $0x38] sm:$0xff]
        %v1122 = vld [vmem:[#allocation2 + $0x40] sm:$0xff]
        %v1123 = vld [vmem:[#allocation2 + $0x48] sm:$0xff]
        %v1124 = vld [vmem:[#allocation2 + $0x50] sm:$0xff]
        %v1125 = vld [vmem:[#allocation2 + $0x58] sm:$0xff]
        %v1126 = vld [vmem:[#allocation2 + $0x60] sm:$0xff]
        %v1127 = vld [vmem:[#allocation2 + $0x68] sm:$0xff]
        %v1128 = vld [vmem:[#allocation2 + $0x70] sm:$0xff]
        %v1129 = vld [vmem:[#allocation2 + $0x78] sm:$0xff]
        %v1130 = vld [vmem:[#allocation2 + $0xa0] sm:$0xff]
        %v1131 = vld [vmem:[#allocation2 + $0xa8] sm:$0xff]
        %v1132 = vld [vmem:[#allocation2 + $0xb0] sm:$0xff]
        %v1133 = vld [vmem:[#allocation2 + $0xb8] sm:$0xff]
        %v1134 = vld [vmem:[#allocation2 + $0xc0] sm:$0xff]
        %v1135 = vld [vmem:[#allocation2 + $0xc8] sm:$0xff]
        %v1136 = vld [vmem:[#allocation2 + $0xd0] sm:$0xff]
        %v1137 = vld [vmem:[#allocation2 + $0xd8] sm:$0xff]
        %v1138 = vld [vmem:[#allocation2 + $0xe0] sm:$0xff]
        %v1139 = vld [vmem:[#allocation2 + $0xe8] sm:$0xff]
        %v1140 = vld [vmem:[#allocation2 + $0xf0] sm:$0xff]
        %v1141 = vld [vmem:[#allocation2 + $0xf8] sm:$0xff]
        %v1142 = vld [vmem:[#allocation2 + $0x100] sm:$0xff]
        %v1143 = vld [vmem:[#allocation2 + $0x108] sm:$0xff]
        %v1144 = vld [vmem:[#allocation2 + $0x110] sm:$0xff]
        %v1145 = vld [vmem:[#allocation2 + $0x118] sm:$0xff]
        %v1146 = vld [vmem:[%s816] sm:$0xff]
        %v1147 = vld [vmem:[%s816 + $0x8] sm:$0xff]
        %v1148 = vld [vmem:[%s816 + $0x10] sm:$0xff]
        %v1149 = vld [vmem:[%s816 + $0x18] sm:$0xff]
        %v1150 = vld [vmem:[%s816 + $0x20] sm:$0xff]
        %v1151 = vld [vmem:[%s816 + $0x28] sm:$0xff]
        %v1152 = vld [vmem:[%s816 + $0x30] sm:$0xff]
        %v1153 = vld [vmem:[%s816 + $0x38] sm:$0xff]
        %v1154 = vld [vmem:[%s816 + $0x40] sm:$0xff]
        %v1155 = vld [vmem:[%s816 + $0x48] sm:$0xff]
        %v1156 = vld [vmem:[%s816 + $0x50] sm:$0xff]
        %v1157 = vld [vmem:[%s816 + $0x58] sm:$0xff]
        %v1158 = vld [vmem:[%s816 + $0x60] sm:$0xff]
        %v1159 = vld [vmem:[%s816 + $0x68] sm:$0xff]
        %v1160 = vld [vmem:[%s816 + $0x70] sm:$0xff]
        %v1161 = vld [vmem:[%s816 + $0x78] sm:$0xff]
        %v1162 = vld [vmem:[%s816 + $0xa0] sm:$0xff]
        %v1163 = vld [vmem:[%s816 + $0xa8] sm:$0xff]
        %v1164 = vld [vmem:[%s816 + $0xb0] sm:$0xff]
        %v1165 = vld [vmem:[%s816 + $0xb8] sm:$0xff]
        %v1166 = vld [vmem:[%s816 + $0xc0] sm:$0xff]
        %v1167 = vld [vmem:[%s816 + $0xc8] sm:$0xff]
        %v1168 = vld [vmem:[%s816 + $0xd0] sm:$0xff]
        %v1169 = vld [vmem:[%s816 + $0xd8] sm:$0xff]
        %v1170 = vld [vmem:[%s816 + $0xe0] sm:$0xff]
        %v1171 = vld [vmem:[%s816 + $0xe8] sm:$0xff]
        %v1172 = vld [vmem:[%s816 + $0xf0] sm:$0xff]
        %v1173 = vld [vmem:[%s816 + $0xf8] sm:$0xff]
        %v1174 = vld [vmem:[%s816 + $0x100] sm:$0xff]
        %v1175 = vld [vmem:[%s816 + $0x108] sm:$0xff]
        %v1176 = vld [vmem:[%s816 + $0x110] sm:$0xff]
        %v1177 = vld [vmem:[%s816 + $0x118] sm:$0xff]
        %v1178 = vadd.f32 %v1114, %v1146
        %v1179 = vadd.f32 %v1115, %v1147
        %v1180 = vadd.f32 %v1116, %v1148
        %v1181 = vadd.f32 %v1117, %v1149
        %v1182 = vadd.f32 %v1118, %v1150
        %v1183 = vadd.f32 %v1119, %v1151
        %v1184 = vadd.f32 %v1120, %v1152
        %v1185 = vadd.f32 %v1121, %v1153
        %v1186 = vadd.f32 %v1122, %v1154
        %v1187 = vadd.f32 %v1123, %v1155
        %v1188 = vadd.f32 %v1124, %v1156
        %v1189 = vadd.f32 %v1125, %v1157
        %v1190 = vadd.f32 %v1126, %v1158
        %v1191 = vadd.f32 %v1127, %v1159
        %v1192 = vadd.f32 %v1128, %v1160
        %v1193 = vadd.f32 %v1129, %v1161
        %v1194 = vadd.f32 %v1130, %v1162
        %v1195 = vadd.f32 %v1131, %v1163
        %v1196 = vadd.f32 %v1132, %v1164
        %v1197 = vadd.f32 %v1133, %v1165
        %v1198 = vadd.f32 %v1134, %v1166
        %v1199 = vadd.f32 %v1135, %v1167
        %v1200 = vadd.f32 %v1136, %v1168
        %v1201 = vadd.f32 %v1137, %v1169
        %v1202 = vadd.f32 %v1138, %v1170
        %v1203 = vadd.f32 %v1139, %v1171
        %v1204 = vadd.f32 %v1140, %v1172
        %v1205 = vadd.f32 %v1141, %v1173
        %v1206 = vadd.f32 %v1142, %v1174
        %v1207 = vadd.f32 %v1143, %v1175
        %v1208 = vadd.f32 %v1144, %v1176
        %v1209 = vadd.f32 %v1145, %v1177
        %s1210 = scalar_lea.vmem [#allocation2], 32
        %v1211 = vld [vmem:[%s1210] sm:$0xff]
        %v1212 = vld [vmem:[%s1210 + $0x8] sm:$0xff]
        %v1213 = vld [vmem:[%s1210 + $0x10] sm:$0xff]
        %v1214 = vld [vmem:[%s1210 + $0x18] sm:$0xff]
        %v1215 = vld [vmem:[%s1210 + $0x20] sm:$0xff]
        %v1216 = vld [vmem:[%s1210 + $0x28] sm:$0xff]
        %v1217 = vld [vmem:[%s1210 + $0x30] sm:$0xff]
        %v1218 = vld [vmem:[%s1210 + $0x38] sm:$0xff]
        %v1219 = vld [vmem:[%s1210 + $0x40] sm:$0xff]
        %v1220 = vld [vmem:[%s1210 + $0x48] sm:$0xff]
        %v1221 = vld [vmem:[%s1210 + $0x50] sm:$0xff]
        %v1222 = vld [vmem:[%s1210 + $0x58] sm:$0xff]
        %v1223 = vld [vmem:[%s1210 + $0x60] sm:$0xff]
        %v1224 = vld [vmem:[%s1210 + $0x68] sm:$0xff]
        %v1225 = vld [vmem:[%s1210 + $0x70] sm:$0xff]
        %v1226 = vld [vmem:[%s1210 + $0x78] sm:$0xff]
        %v1227 = vld [vmem:[%s1210 + $0xa0] sm:$0xff]
        %v1228 = vld [vmem:[%s1210 + $0xa8] sm:$0xff]
        %v1229 = vld [vmem:[%s1210 + $0xb0] sm:$0xff]
        %v1230 = vld [vmem:[%s1210 + $0xb8] sm:$0xff]
        %v1231 = vld [vmem:[%s1210 + $0xc0] sm:$0xff]
        %v1232 = vld [vmem:[%s1210 + $0xc8] sm:$0xff]
        %v1233 = vld [vmem:[%s1210 + $0xd0] sm:$0xff]
        %v1234 = vld [vmem:[%s1210 + $0xd8] sm:$0xff]
        %v1235 = vld [vmem:[%s1210 + $0xe0] sm:$0xff]
        %v1236 = vld [vmem:[%s1210 + $0xe8] sm:$0xff]
        %v1237 = vld [vmem:[%s1210 + $0xf0] sm:$0xff]
        %v1238 = vld [vmem:[%s1210 + $0xf8] sm:$0xff]
        %v1239 = vld [vmem:[%s1210 + $0x100] sm:$0xff]
        %v1240 = vld [vmem:[%s1210 + $0x108] sm:$0xff]
        %v1241 = vld [vmem:[%s1210 + $0x110] sm:$0xff]
        %v1242 = vld [vmem:[%s1210 + $0x118] sm:$0xff]
        %v1243 = vadd.f32 %v1178, %v1211
        %v1244 = vadd.f32 %v1179, %v1212
        %v1245 = vadd.f32 %v1180, %v1213
        %v1246 = vadd.f32 %v1181, %v1214
        %v1247 = vadd.f32 %v1182, %v1215
        %v1248 = vadd.f32 %v1183, %v1216
        %v1249 = vadd.f32 %v1184, %v1217
        %v1250 = vadd.f32 %v1185, %v1218
        %v1251 = vadd.f32 %v1186, %v1219
        %v1252 = vadd.f32 %v1187, %v1220
        %v1253 = vadd.f32 %v1188, %v1221
        %v1254 = vadd.f32 %v1189, %v1222
        %v1255 = vadd.f32 %v1190, %v1223
        %v1256 = vadd.f32 %v1191, %v1224
        %v1257 = vadd.f32 %v1192, %v1225
        %v1258 = vadd.f32 %v1193, %v1226
        %v1259 = vadd.f32 %v1194, %v1227
        %v1260 = vadd.f32 %v1195, %v1228
        %v1261 = vadd.f32 %v1196, %v1229
        %v1262 = vadd.f32 %v1197, %v1230
        %v1263 = vadd.f32 %v1198, %v1231
        %v1264 = vadd.f32 %v1199, %v1232
        %v1265 = vadd.f32 %v1200, %v1233
        %v1266 = vadd.f32 %v1201, %v1234
        %v1267 = vadd.f32 %v1202, %v1235
        %v1268 = vadd.f32 %v1203, %v1236
        %v1269 = vadd.f32 %v1204, %v1237
        %v1270 = vadd.f32 %v1205, %v1238
        %v1271 = vadd.f32 %v1206, %v1239
        %v1272 = vadd.f32 %v1207, %v1240
        %v1273 = vadd.f32 %v1208, %v1241
        %v1274 = vadd.f32 %v1209, %v1242
        %p1275 = scmp.eq.s32.totalorder %s20, 0
        %p1276 = pnand %p1275, %p949
        %p1277 = pneg %p1276
        // Predicated region
        $region163: #{tpu_custom_call.1} parent=133 // pred_check
          _
        $region164: #{tpu_custom_call.1} parent=133 // pred_check_branch
          %1279 = sbr.rel (%p1276) target = $region166
        $region165: #{tpu_custom_call.1} parent=133 // pred_region
          %1280 = vst.msk [vmem:[#allocation3] sm:$0x1] %vm899, 0.0
          %1281 = vst.msk [vmem:[#allocation4] sm:$0x1] %vm899, 0.0
        $region166: #{tpu_custom_call.1} parent=133 // pred_fallthru
          _
        // Predicated region
        $region167: #{tpu_custom_call.1} parent=133 // pred_check
          %p1282 = pneg %p1275
        $region168: #{tpu_custom_call.1} parent=133 // pred_check_branch
          %1284 = sbr.rel (%p1282) target = $region170
        $region169: #{tpu_custom_call.1} parent=133 // pred_region
          %v1285 = vld [vmem:[#allocation3] sm:$0x1]
          %v1286 = vsel %vm817, %v1243, 0.0
          %v1287 = vsel %vm817, %v1244, 0.0
          %v1288 = vadd.f32 %v1286, %v1287
          %v1289 = vsel %vm817, %v1245, 0.0
          %v1290 = vadd.f32 %v1288, %v1289
          %v1291 = vsel %vm817, %v1246, 0.0
          %v1292 = vadd.f32 %v1290, %v1291
          %v1293 = vsel %vm817, %v1247, 0.0
          %v1294 = vadd.f32 %v1292, %v1293
          %v1295 = vsel %vm817, %v1248, 0.0
          %v1296 = vadd.f32 %v1294, %v1295
          %v1297 = vsel %vm817, %v1249, 0.0
          %v1298 = vadd.f32 %v1296, %v1297
          %v1299 = vsel %vm817, %v1250, 0.0
          %v1300 = vadd.f32 %v1298, %v1299
          %v1301 = vsel %vm817, %v1251, 0.0
          %v1302 = vadd.f32 %v1300, %v1301
          %v1303 = vsel %vm817, %v1252, 0.0
          %v1304 = vadd.f32 %v1302, %v1303
          %v1305 = vsel %vm817, %v1253, 0.0
          %v1306 = vadd.f32 %v1304, %v1305
          %v1307 = vsel %vm817, %v1254, 0.0
          %v1308 = vadd.f32 %v1306, %v1307
          %v1309 = vsel %vm817, %v1255, 0.0
          %v1310 = vadd.f32 %v1308, %v1309
          %v1311 = vsel %vm817, %v1256, 0.0
          %v1312 = vadd.f32 %v1310, %v1311
          %v1313 = vsel %vm817, %v1257, 0.0
          %v1314 = vadd.f32 %v1312, %v1313
          %v1315 = vsel %vm817, %v1258, 0.0
          %v1316 = vadd.f32 %v1314, %v1315
          %v1317 = vsel %vm817, %v1259, 0.0
          %v1318 = vadd.f32 %v1316, %v1317
          %v1319 = vsel %vm817, %v1260, 0.0
          %v1320 = vadd.f32 %v1318, %v1319
          %v1321 = vsel %vm817, %v1261, 0.0
          %v1322 = vadd.f32 %v1320, %v1321
          %v1323 = vsel %vm817, %v1262, 0.0
          %v1324 = vadd.f32 %v1322, %v1323
          %v1325 = vsel %vm817, %v1263, 0.0
          %v1326 = vadd.f32 %v1324, %v1325
          %v1327 = vsel %vm817, %v1264, 0.0
          %v1328 = vadd.f32 %v1326, %v1327
          %v1329 = vsel %vm817, %v1265, 0.0
          %v1330 = vadd.f32 %v1328, %v1329
          %v1331 = vsel %vm817, %v1266, 0.0
          %v1332 = vadd.f32 %v1330, %v1331
          %v1333 = vsel %vm817, %v1267, 0.0
          %v1334 = vadd.f32 %v1332, %v1333
          %v1335 = vsel %vm817, %v1268, 0.0
          %v1336 = vadd.f32 %v1334, %v1335
          %v1337 = vsel %vm817, %v1269, 0.0
          %v1338 = vadd.f32 %v1336, %v1337
          %v1339 = vsel %vm817, %v1270, 0.0
          %v1340 = vadd.f32 %v1338, %v1339
          %v1341 = vsel %vm817, %v1271, 0.0
          %v1342 = vadd.f32 %v1340, %v1341
          %v1343 = vsel %vm817, %v1272, 0.0
          %v1344 = vadd.f32 %v1342, %v1343
          %v1345 = vsel %vm817, %v1273, 0.0
          %v1346 = vadd.f32 %v1344, %v1345
          %v1347 = vsel %vm817, %v1274, 0.0
          %v1348 = vadd.f32 %v1346, %v1347
          %v1349 = vrot.slane %v1348, 4
          %v1350 = vadd.f32 %v1348, %v1349
          %v1351 = vrot.slane %v1350, 2
          %v1352 = vadd.f32 %v1350, %v1351
          %v1353 = vrot.slane %v1352, 1
          %v1354 = vadd.f32 %v1352, %v1353
          %v1355 = vadd.f32 %v1285, %v1354
          %1356 = vst.msk [vmem:[#allocation3] sm:$0x1] %vm899, %v1355
          %v1357 = vld [vmem:[#allocation4] sm:$0x1]
          %v1358 = vmul.f32 %v1243, %v1243
          %v1359 = vmul.f32 %v1244, %v1244
          %v1360 = vmul.f32 %v1245, %v1245
          %v1361 = vmul.f32 %v1246, %v1246
          %v1362 = vmul.f32 %v1247, %v1247
          %v1363 = vmul.f32 %v1248, %v1248
          %v1364 = vmul.f32 %v1249, %v1249
          %v1365 = vmul.f32 %v1250, %v1250
          %v1366 = vmul.f32 %v1251, %v1251
          %v1367 = vmul.f32 %v1252, %v1252
          %v1368 = vmul.f32 %v1253, %v1253
          %v1369 = vmul.f32 %v1254, %v1254
          %v1370 = vmul.f32 %v1255, %v1255
          %v1371 = vmul.f32 %v1256, %v1256
          %v1372 = vmul.f32 %v1257, %v1257
          %v1373 = vmul.f32 %v1258, %v1258
          %v1374 = vmul.f32 %v1259, %v1259
          %v1375 = vmul.f32 %v1260, %v1260
          %v1376 = vmul.f32 %v1261, %v1261
          %v1377 = vmul.f32 %v1262, %v1262
          %v1378 = vmul.f32 %v1263, %v1263
          %v1379 = vmul.f32 %v1264, %v1264
          %v1380 = vmul.f32 %v1265, %v1265
          %v1381 = vmul.f32 %v1266, %v1266
          %v1382 = vmul.f32 %v1267, %v1267
          %v1383 = vmul.f32 %v1268, %v1268
          %v1384 = vmul.f32 %v1269, %v1269
          %v1385 = vmul.f32 %v1270, %v1270
          %v1386 = vmul.f32 %v1271, %v1271
          %v1387 = vmul.f32 %v1272, %v1272
          %v1388 = vmul.f32 %v1273, %v1273
          %v1389 = vmul.f32 %v1274, %v1274
          %v1390 = vsel %vm817, %v1358, 0.0
          %v1391 = vsel %vm817, %v1359, 0.0
          %v1392 = vadd.f32 %v1390, %v1391
          %v1393 = vsel %vm817, %v1360, 0.0
          %v1394 = vadd.f32 %v1392, %v1393
          %v1395 = vsel %vm817, %v1361, 0.0
          %v1396 = vadd.f32 %v1394, %v1395
          %v1397 = vsel %vm817, %v1362, 0.0
          %v1398 = vadd.f32 %v1396, %v1397
          %v1399 = vsel %vm817, %v1363, 0.0
          %v1400 = vadd.f32 %v1398, %v1399
          %v1401 = vsel %vm817, %v1364, 0.0
          %v1402 = vadd.f32 %v1400, %v1401
          %v1403 = vsel %vm817, %v1365, 0.0
          %v1404 = vadd.f32 %v1402, %v1403
          %v1405 = vsel %vm817, %v1366, 0.0
          %v1406 = vadd.f32 %v1404, %v1405
          %v1407 = vsel %vm817, %v1367, 0.0
          %v1408 = vadd.f32 %v1406, %v1407
          %v1409 = vsel %vm817, %v1368, 0.0
          %v1410 = vadd.f32 %v1408, %v1409
          %v1411 = vsel %vm817, %v1369, 0.0
          %v1412 = vadd.f32 %v1410, %v1411
          %v1413 = vsel %vm817, %v1370, 0.0
          %v1414 = vadd.f32 %v1412, %v1413
          %v1415 = vsel %vm817, %v1371, 0.0
          %v1416 = vadd.f32 %v1414, %v1415
          %v1417 = vsel %vm817, %v1372, 0.0
          %v1418 = vadd.f32 %v1416, %v1417
          %v1419 = vsel %vm817, %v1373, 0.0
          %v1420 = vadd.f32 %v1418, %v1419
          %v1421 = vsel %vm817, %v1374, 0.0
          %v1422 = vadd.f32 %v1420, %v1421
          %v1423 = vsel %vm817, %v1375, 0.0
          %v1424 = vadd.f32 %v1422, %v1423
          %v1425 = vsel %vm817, %v1376, 0.0
          %v1426 = vadd.f32 %v1424, %v1425
          %v1427 = vsel %vm817, %v1377, 0.0
          %v1428 = vadd.f32 %v1426, %v1427
          %v1429 = vsel %vm817, %v1378, 0.0
          %v1430 = vadd.f32 %v1428, %v1429
          %v1431 = vsel %vm817, %v1379, 0.0
          %v1432 = vadd.f32 %v1430, %v1431
          %v1433 = vsel %vm817, %v1380, 0.0
          %v1434 = vadd.f32 %v1432, %v1433
          %v1435 = vsel %vm817, %v1381, 0.0
          %v1436 = vadd.f32 %v1434, %v1435
          %v1437 = vsel %vm817, %v1382, 0.0
          %v1438 = vadd.f32 %v1436, %v1437
          %v1439 = vsel %vm817, %v1383, 0.0
          %v1440 = vadd.f32 %v1438, %v1439
          %v1441 = vsel %vm817, %v1384, 0.0
          %v1442 = vadd.f32 %v1440, %v1441
          %v1443 = vsel %vm817, %v1385, 0.0
          %v1444 = vadd.f32 %v1442, %v1443
          %v1445 = vsel %vm817, %v1386, 0.0
          %v1446 = vadd.f32 %v1444, %v1445
          %v1447 = vsel %vm817, %v1387, 0.0
          %v1448 = vadd.f32 %v1446, %v1447
          %v1449 = vsel %vm817, %v1388, 0.0
          %v1450 = vadd.f32 %v1448, %v1449
          %v1451 = vsel %vm817, %v1389, 0.0
          %v1452 = vadd.f32 %v1450, %v1451
          %v1453 = vrot.slane %v1452, 4
          %v1454 = vadd.f32 %v1452, %v1453
          %v1455 = vrot.slane %v1454, 2
          %v1456 = vadd.f32 %v1454, %v1455
          %v1457 = vrot.slane %v1456, 1
          %v1458 = vadd.f32 %v1456, %v1457
          %v1459 = vadd.f32 %v1357, %v1458
          %1460 = vst.msk [vmem:[#allocation4] sm:$0x1] %vm899, %v1459
        $region170: #{tpu_custom_call.1} parent=133 // pred_fallthru
          _
        %p1461 = pnand %p1275, %p1030
        %p1462 = pneg %p1461
        // Predicated region
        $region171: #{tpu_custom_call.1} parent=133 // pred_check
          _
        $region172: #{tpu_custom_call.1} parent=133 // pred_check_branch
          %1464 = sbr.rel (%p1461) target = $region174
        $region173: #{tpu_custom_call.1} parent=133 // pred_region
          %v1465 = vld [vmem:[#allocation3] sm:$0x1]
          %v1466 = vmul.f32 %v1465, 0.001953125
          %v1467 = vld [vmem:[#allocation4] sm:$0x1]
          %v1468 = vmul.f32 %v1467, 0.001953125
          %v1469 = vmul.f32 %v1466, %v1466
          %v1470 = vsub.f32 %v1468, %v1469
          %v1471 = vmax.f32 %v1470, 0.0
          %1472 = vst.msk [vmem:[#allocation3] sm:$0x1] %vm899, %v1466
          %v1473 = vadd.f32 %v1471, 0.00081
          %v1474 = vrsqrt.pop %v1473
          %1475 = vst.msk [vmem:[#allocation4] sm:$0x1] %vm899, %v1474
        $region174: #{tpu_custom_call.1} parent=133 // pred_fallthru
          _
        %p1476 = scmp.eq.s32.totalorder %s20, 1
        // Predicated region
        $region175: #{tpu_custom_call.1} parent=133 // pred_check
          %p1477 = pneg %p1476
        $region176: #{tpu_custom_call.1} parent=133 // pred_check_branch
          %1479 = sbr.rel (%p1477) target = $region178
        $region177: #{tpu_custom_call.1} parent=133 // pred_region
          %v1480 = vld [vmem:[#allocation3] sm:$0x1]
          %v1482 = vlaneseq
          %v1483 = vshrl.u32 %v1482, 7
          %v1484 = vsub.s32 0, %v1483
          %v1485 = vrot.slane %v1480, %v1484
          %v1487 = vsub.f32 %v1243, %v1485
          %v1488 = vsub.f32 %v1244, %v1485
          %v1489 = vsub.f32 %v1245, %v1485
          %v1490 = vsub.f32 %v1246, %v1485
          %v1491 = vsub.f32 %v1247, %v1485
          %v1492 = vsub.f32 %v1248, %v1485
          %v1493 = vsub.f32 %v1249, %v1485
          %v1494 = vsub.f32 %v1250, %v1485
          %v1495 = vsub.f32 %v1251, %v1485
          %v1496 = vsub.f32 %v1252, %v1485
          %v1497 = vsub.f32 %v1253, %v1485
          %v1498 = vsub.f32 %v1254, %v1485
          %v1499 = vsub.f32 %v1255, %v1485
          %v1500 = vsub.f32 %v1256, %v1485
          %v1501 = vsub.f32 %v1257, %v1485
          %v1502 = vsub.f32 %v1258, %v1485
          %v1503 = vsub.f32 %v1259, %v1485
          %v1504 = vsub.f32 %v1260, %v1485
          %v1505 = vsub.f32 %v1261, %v1485
          %v1506 = vsub.f32 %v1262, %v1485
          %v1507 = vsub.f32 %v1263, %v1485
          %v1508 = vsub.f32 %v1264, %v1485
          %v1509 = vsub.f32 %v1265, %v1485
          %v1510 = vsub.f32 %v1266, %v1485
          %v1511 = vsub.f32 %v1267, %v1485
          %v1512 = vsub.f32 %v1268, %v1485
          %v1513 = vsub.f32 %v1269, %v1485
          %v1514 = vsub.f32 %v1270, %v1485
          %v1515 = vsub.f32 %v1271, %v1485
          %v1516 = vsub.f32 %v1272, %v1485
          %v1517 = vsub.f32 %v1273, %v1485
          %v1518 = vsub.f32 %v1274, %v1485
          %v1519 = vld [vmem:[#allocation4] sm:$0x1]
          %v1521 = vlaneseq
          %v1522 = vshrl.u32 %v1521, 7
          %v1523 = vsub.s32 0, %v1522
          %v1524 = vrot.slane %v1519, %v1523
          %v1526 = vmul.f32 %v1487, %v1524
          %v1527 = vmul.f32 %v1488, %v1524
          %v1528 = vmul.f32 %v1489, %v1524
          %v1529 = vmul.f32 %v1490, %v1524
          %v1530 = vmul.f32 %v1491, %v1524
          %v1531 = vmul.f32 %v1492, %v1524
          %v1532 = vmul.f32 %v1493, %v1524
          %v1533 = vmul.f32 %v1494, %v1524
          %v1534 = vmul.f32 %v1495, %v1524
          %v1535 = vmul.f32 %v1496, %v1524
          %v1536 = vmul.f32 %v1497, %v1524
          %v1537 = vmul.f32 %v1498, %v1524
          %v1538 = vmul.f32 %v1499, %v1524
          %v1539 = vmul.f32 %v1500, %v1524
          %v1540 = vmul.f32 %v1501, %v1524
          %v1541 = vmul.f32 %v1502, %v1524
          %v1542 = vmul.f32 %v1503, %v1524
          %v1543 = vmul.f32 %v1504, %v1524
          %v1544 = vmul.f32 %v1505, %v1524
          %v1545 = vmul.f32 %v1506, %v1524
          %v1546 = vmul.f32 %v1507, %v1524
          %v1547 = vmul.f32 %v1508, %v1524
          %v1548 = vmul.f32 %v1509, %v1524
          %v1549 = vmul.f32 %v1510, %v1524
          %v1550 = vmul.f32 %v1511, %v1524
          %v1551 = vmul.f32 %v1512, %v1524
          %v1552 = vmul.f32 %v1513, %v1524
          %v1553 = vmul.f32 %v1514, %v1524
          %v1554 = vmul.f32 %v1515, %v1524
          %v1555 = vmul.f32 %v1516, %v1524
          %v1556 = vmul.f32 %v1517, %v1524
          %v1557 = vmul.f32 %v1518, %v1524
          %1558 = vst.msk [vmem:[%s514] sm:$0xff] %vm817, %v1526
          %1559 = vst.msk [vmem:[%s514 + $0x8] sm:$0xff] %vm817, %v1527
          %1560 = vst.msk [vmem:[%s514 + $0x10] sm:$0xff] %vm817, %v1528
          %1561 = vst.msk [vmem:[%s514 + $0x18] sm:$0xff] %vm817, %v1529
          %1562 = vst.msk [vmem:[%s514 + $0x20] sm:$0xff] %vm817, %v1530
          %1563 = vst.msk [vmem:[%s514 + $0x28] sm:$0xff] %vm817, %v1531
          %1564 = vst.msk [vmem:[%s514 + $0x30] sm:$0xff] %vm817, %v1532
          %1565 = vst.msk [vmem:[%s514 + $0x38] sm:$0xff] %vm817, %v1533
          %1566 = vst.msk [vmem:[%s514 + $0x40] sm:$0xff] %vm817, %v1534
          %1567 = vst.msk [vmem:[%s514 + $0x48] sm:$0xff] %vm817, %v1535
          %1568 = vst.msk [vmem:[%s514 + $0x50] sm:$0xff] %vm817, %v1536
          %1569 = vst.msk [vmem:[%s514 + $0x58] sm:$0xff] %vm817, %v1537
          %1570 = vst.msk [vmem:[%s514 + $0x60] sm:$0xff] %vm817, %v1538
          %1571 = vst.msk [vmem:[%s514 + $0x68] sm:$0xff] %vm817, %v1539
          %1572 = vst.msk [vmem:[%s514 + $0x70] sm:$0xff] %vm817, %v1540
          %1573 = vst.msk [vmem:[%s514 + $0x78] sm:$0xff] %vm817, %v1541
          %1574 = vst.msk [vmem:[%s514 + $0x80] sm:$0xff] %vm817, %v1542
          %1575 = vst.msk [vmem:[%s514 + $0x88] sm:$0xff] %vm817, %v1543
          %1576 = vst.msk [vmem:[%s514 + $0x90] sm:$0xff] %vm817, %v1544
          %1577 = vst.msk [vmem:[%s514 + $0x98] sm:$0xff] %vm817, %v1545
          %1578 = vst.msk [vmem:[%s514 + $0xa0] sm:$0xff] %vm817, %v1546
          %1579 = vst.msk [vmem:[%s514 + $0xa8] sm:$0xff] %vm817, %v1547
          %1580 = vst.msk [vmem:[%s514 + $0xb0] sm:$0xff] %vm817, %v1548
          %1581 = vst.msk [vmem:[%s514 + $0xb8] sm:$0xff] %vm817, %v1549
          %1582 = vst.msk [vmem:[%s514 + $0xc0] sm:$0xff] %vm817, %v1550
          %1583 = vst.msk [vmem:[%s514 + $0xc8] sm:$0xff] %vm817, %v1551
          %1584 = vst.msk [vmem:[%s514 + $0xd0] sm:$0xff] %vm817, %v1552
          %1585 = vst.msk [vmem:[%s514 + $0xd8] sm:$0xff] %vm817, %v1553
          %1586 = vst.msk [vmem:[%s514 + $0xe0] sm:$0xff] %vm817, %v1554
          %1587 = vst.msk [vmem:[%s514 + $0xe8] sm:$0xff] %vm817, %v1555
          %1588 = vst.msk [vmem:[%s514 + $0xf0] sm:$0xff] %vm817, %v1556
          %1589 = vst.msk [vmem:[%s514 + $0xf8] sm:$0xff] %vm817, %v1557
        $region178: #{tpu_custom_call.1} parent=133 // pred_fallthru
          _
        %s1590 = sand.u32 %s145, 1
        %s1591 = sand.u32 %s145, 1
        %s1592 = smul.addr %s1591, 256
        %s1593 = scalar_lea.vmem [#allocation8], %s1592
        // Predicated region
        $region179: #{tpu_custom_call.1} parent=133 // pred_check
          %p1594 = pneg %p155
        $region180: #{tpu_custom_call.1} parent=133 // pred_check_branch
          %1596 = sbr.rel (%p1594) target = $region182
        $region181: #{tpu_custom_call.1} parent=133 // pred_region
          %s1597 = smul.u32 %s21, %s20
          %s1598 = smul.u32 8, %s1597
          %s1599 = smul.addr %s1598, 2
          %s1600 = sadd.s32 %s19, %s1599
          %s1601 = smul.addr %s1600, 8
          %s1602 = scalar_lea.vmem %s3, %s1601
          // Predicated region
          $region183: #{tpu_custom_call.1} parent=181 // pred_check
            _
          $region184: #{tpu_custom_call.1} parent=181 // pred_check_branch
            %1604 = sbr.rel (0) target = $region186
          $region185: #{tpu_custom_call.1} parent=181 // pred_region
            // Predicated region
            $region187: #{tpu_custom_call.1} parent=185 // pred_check
              _
            $region188: #{tpu_custom_call.1} parent=185 // pred_check_branch
              %1606 = sbr.rel (0) target = $region190
            $region189: #{tpu_custom_call.1} parent=185 // pred_region
              // Predicated region
              $region202: #{tpu_custom_call.1} parent=189 // pred_check
                _
              $region203: #{tpu_custom_call.1} parent=189 // pred_check_branch
                %1683 = sbr.rel (0) target = $region205
              $region204: #{tpu_custom_call.1} parent=189 // pred_region
                loop: start=0, step=1, limit=1
                $region206: #{tpu_custom_call.1} parent=204 // loop_pre_header
                  _
                $region207: #{tpu_custom_call.1} parent=204 // loop_header
                  %s1685 = sphi 0, %s1689
                  %p1686 = scmp.ge.s32.totalorder %s1685, 1
                  %s1690 = sphi %s1593, %s1593
                  %s1691 = sphi %s1602, %s1602
                $region208: #{tpu_custom_call.1} parent=204 // loop_header_branch
                  %1688 = sbr.rel (%p1686) target = $region212
                $region209: #{tpu_custom_call.1} parent=204 // loop_body
                  %v1692 = vld [vmem:[%s1690] sm:$0xff]
                  %1693 = vst [vmem:[%s1691] sm:$0xff] %v1692
                  %v1694 = vld [vmem:[%s1690 + $0x8] sm:$0xff]
                  %1695 = vst [vmem:[%s1691 + $0x8] sm:$0xff] %v1694
                  %v1696 = vld [vmem:[%s1690 + $0x10] sm:$0xff]
                  %1697 = vst [vmem:[%s1691 + $0x10] sm:$0xff] %v1696
                  %v1698 = vld [vmem:[%s1690 + $0x18] sm:$0xff]
                  %1699 = vst [vmem:[%s1691 + $0x18] sm:$0xff] %v1698
                  %v1700 = vld [vmem:[%s1690 + $0x20] sm:$0xff]
                  %1701 = vst [vmem:[%s1691 + $0x20] sm:$0xff] %v1700
                  %v1702 = vld [vmem:[%s1690 + $0x28] sm:$0xff]
                  %1703 = vst [vmem:[%s1691 + $0x28] sm:$0xff] %v1702
                  %v1704 = vld [vmem:[%s1690 + $0x30] sm:$0xff]
                  %1705 = vst [vmem:[%s1691 + $0x30] sm:$0xff] %v1704
                  %v1706 = vld [vmem:[%s1690 + $0x38] sm:$0xff]
                  %1707 = vst [vmem:[%s1691 + $0x38] sm:$0xff] %v1706
                  %v1708 = vld [vmem:[%s1690 + $0x40] sm:$0xff]
                  %1709 = vst [vmem:[%s1691 + $0x40] sm:$0xff] %v1708
                  %v1710 = vld [vmem:[%s1690 + $0x48] sm:$0xff]
                  %1711 = vst [vmem:[%s1691 + $0x48] sm:$0xff] %v1710
                  %v1712 = vld [vmem:[%s1690 + $0x50] sm:$0xff]
                  %1713 = vst [vmem:[%s1691 + $0x50] sm:$0xff] %v1712
                  %v1714 = vld [vmem:[%s1690 + $0x58] sm:$0xff]
                  %1715 = vst [vmem:[%s1691 + $0x58] sm:$0xff] %v1714
                  %v1716 = vld [vmem:[%s1690 + $0x60] sm:$0xff]
                  %1717 = vst [vmem:[%s1691 + $0x60] sm:$0xff] %v1716
                  %v1718 = vld [vmem:[%s1690 + $0x68] sm:$0xff]
                  %1719 = vst [vmem:[%s1691 + $0x68] sm:$0xff] %v1718
                  %v1720 = vld [vmem:[%s1690 + $0x70] sm:$0xff]
                  %1721 = vst [vmem:[%s1691 + $0x70] sm:$0xff] %v1720
                  %v1722 = vld [vmem:[%s1690 + $0x78] sm:$0xff]
                  %1723 = vst [vmem:[%s1691 + $0x78] sm:$0xff] %v1722
                  %v1724 = vld [vmem:[%s1690 + $0x80] sm:$0xff]
                  %1725 = vst [vmem:[%s1691 + $0x100] sm:$0xff] %v1724
                  %v1726 = vld [vmem:[%s1690 + $0x88] sm:$0xff]
                  %1727 = vst [vmem:[%s1691 + $0x108] sm:$0xff] %v1726
                  %v1728 = vld [vmem:[%s1690 + $0x90] sm:$0xff]
                  %1729 = vst [vmem:[%s1691 + $0x110] sm:$0xff] %v1728
                  %v1730 = vld [vmem:[%s1690 + $0x98] sm:$0xff]
                  %1731 = vst [vmem:[%s1691 + $0x118] sm:$0xff] %v1730
                  %v1732 = vld [vmem:[%s1690 + $0xa0] sm:$0xff]
                  %1733 = vst [vmem:[%s1691 + $0x120] sm:$0xff] %v1732
                  %v1734 = vld [vmem:[%s1690 + $0xa8] sm:$0xff]
                  %1735 = vst [vmem:[%s1691 + $0x128] sm:$0xff] %v1734
                  %v1736 = vld [vmem:[%s1690 + $0xb0] sm:$0xff]
                  %1737 = vst [vmem:[%s1691 + $0x130] sm:$0xff] %v1736
                  %v1738 = vld [vmem:[%s1690 + $0xb8] sm:$0xff]
                  %1739 = vst [vmem:[%s1691 + $0x138] sm:$0xff] %v1738
                  %v1740 = vld [vmem:[%s1690 + $0xc0] sm:$0xff]
                  %1741 = vst [vmem:[%s1691 + $0x140] sm:$0xff] %v1740
                  %v1742 = vld [vmem:[%s1690 + $0xc8] sm:$0xff]
                  %1743 = vst [vmem:[%s1691 + $0x148] sm:$0xff] %v1742
                  %v1744 = vld [vmem:[%s1690 + $0xd0] sm:$0xff]
                  %1745 = vst [vmem:[%s1691 + $0x150] sm:$0xff] %v1744
                  %v1746 = vld [vmem:[%s1690 + $0xd8] sm:$0xff]
                  %1747 = vst [vmem:[%s1691 + $0x158] sm:$0xff] %v1746
                  %v1748 = vld [vmem:[%s1690 + $0xe0] sm:$0xff]
                  %1749 = vst [vmem:[%s1691 + $0x160] sm:$0xff] %v1748
                  %v1750 = vld [vmem:[%s1690 + $0xe8] sm:$0xff]
                  %1751 = vst [vmem:[%s1691 + $0x168] sm:$0xff] %v1750
                  %v1752 = vld [vmem:[%s1690 + $0xf0] sm:$0xff]
                  %1753 = vst [vmem:[%s1691 + $0x170] sm:$0xff] %v1752
                  %v1754 = vld [vmem:[%s1690 + $0xf8] sm:$0xff]
                  %1755 = vst [vmem:[%s1691 + $0x178] sm:$0xff] %v1754
                $region210: #{tpu_custom_call.1} parent=204 // loop_footer
                  %s1689 = sadd.s32 1, %s1685
                $region211: #{tpu_custom_call.1} parent=204 // loop_footer_branch
                  %1684 = sbr.rel target = $region207
                $region212: #{tpu_custom_call.1} parent=204 // loop_exit
                  _
              $region205: #{tpu_custom_call.1} parent=189 // pred_fallthru
                _
              // Predicated region
              $region213: #{tpu_custom_call.1} parent=189 // pred_check
                _
              $region214: #{tpu_custom_call.1} parent=189 // pred_check_branch
                %1757 = sbr.rel target = $region216
              $region215: #{tpu_custom_call.1} parent=189 // pred_region
                _
              $region216: #{tpu_custom_call.1} parent=189 // pred_fallthru
                _
            $region190: #{tpu_custom_call.1} parent=185 // pred_fallthru
              _
            // Predicated region
            $region191: #{tpu_custom_call.1} parent=185 // pred_check
              _
            $region192: #{tpu_custom_call.1} parent=185 // pred_check_branch
              %1608 = sbr.rel target = $region194
            $region193: #{tpu_custom_call.1} parent=185 // pred_region
              loop: start=0, step=1, limit=1
              $region195: #{tpu_custom_call.1} parent=193 // loop_pre_header
                _
              $region196: #{tpu_custom_call.1} parent=193 // loop_header
                %s1611 = sphi 0, %s1615
                %p1612 = scmp.ge.s32.totalorder %s1611, 1
                %s1616 = sphi %s1593, %s1593
                %s1617 = sphi %s1602, %s1602
              $region197: #{tpu_custom_call.1} parent=193 // loop_header_branch
                %1614 = sbr.rel (%p1612) target = $region201
              $region198: #{tpu_custom_call.1} parent=193 // loop_body
                %v1618 = vld [vmem:[%s1616] sm:$0xff]
                %1619 = vst [vmem:[%s1617] sm:$0xff] %v1618
                %v1620 = vld [vmem:[%s1616 + $0x8] sm:$0xff]
                %1621 = vst [vmem:[%s1617 + $0x8] sm:$0xff] %v1620
                %v1622 = vld [vmem:[%s1616 + $0x10] sm:$0xff]
                %1623 = vst [vmem:[%s1617 + $0x10] sm:$0xff] %v1622
                %v1624 = vld [vmem:[%s1616 + $0x18] sm:$0xff]
                %1625 = vst [vmem:[%s1617 + $0x18] sm:$0xff] %v1624
                %v1626 = vld [vmem:[%s1616 + $0x20] sm:$0xff]
                %1627 = vst [vmem:[%s1617 + $0x20] sm:$0xff] %v1626
                %v1628 = vld [vmem:[%s1616 + $0x28] sm:$0xff]
                %1629 = vst [vmem:[%s1617 + $0x28] sm:$0xff] %v1628
                %v1630 = vld [vmem:[%s1616 + $0x30] sm:$0xff]
                %1631 = vst [vmem:[%s1617 + $0x30] sm:$0xff] %v1630
                %v1632 = vld [vmem:[%s1616 + $0x38] sm:$0xff]
                %1633 = vst [vmem:[%s1617 + $0x38] sm:$0xff] %v1632
                %v1634 = vld [vmem:[%s1616 + $0x40] sm:$0xff]
                %1635 = vst [vmem:[%s1617 + $0x40] sm:$0xff] %v1634
                %v1636 = vld [vmem:[%s1616 + $0x48] sm:$0xff]
                %1637 = vst [vmem:[%s1617 + $0x48] sm:$0xff] %v1636
                %v1638 = vld [vmem:[%s1616 + $0x50] sm:$0xff]
                %1639 = vst [vmem:[%s1617 + $0x50] sm:$0xff] %v1638
                %v1640 = vld [vmem:[%s1616 + $0x58] sm:$0xff]
                %1641 = vst [vmem:[%s1617 + $0x58] sm:$0xff] %v1640
                %v1642 = vld [vmem:[%s1616 + $0x60] sm:$0xff]
                %1643 = vst [vmem:[%s1617 + $0x60] sm:$0xff] %v1642
                %v1644 = vld [vmem:[%s1616 + $0x68] sm:$0xff]
                %1645 = vst [vmem:[%s1617 + $0x68] sm:$0xff] %v1644
                %v1646 = vld [vmem:[%s1616 + $0x70] sm:$0xff]
                %1647 = vst [vmem:[%s1617 + $0x70] sm:$0xff] %v1646
                %v1648 = vld [vmem:[%s1616 + $0x78] sm:$0xff]
                %1649 = vst [vmem:[%s1617 + $0x78] sm:$0xff] %v1648
                %v1650 = vld [vmem:[%s1616 + $0x80] sm:$0xff]
                %1651 = vst [vmem:[%s1617 + $0x100] sm:$0xff] %v1650
                %v1652 = vld [vmem:[%s1616 + $0x88] sm:$0xff]
                %1653 = vst [vmem:[%s1617 + $0x108] sm:$0xff] %v1652
                %v1654 = vld [vmem:[%s1616 + $0x90] sm:$0xff]
                %1655 = vst [vmem:[%s1617 + $0x110] sm:$0xff] %v1654
                %v1656 = vld [vmem:[%s1616 + $0x98] sm:$0xff]
                %1657 = vst [vmem:[%s1617 + $0x118] sm:$0xff] %v1656
                %v1658 = vld [vmem:[%s1616 + $0xa0] sm:$0xff]
                %1659 = vst [vmem:[%s1617 + $0x120] sm:$0xff] %v1658
                %v1660 = vld [vmem:[%s1616 + $0xa8] sm:$0xff]
                %1661 = vst [vmem:[%s1617 + $0x128] sm:$0xff] %v1660
                %v1662 = vld [vmem:[%s1616 + $0xb0] sm:$0xff]
                %1663 = vst [vmem:[%s1617 + $0x130] sm:$0xff] %v1662
                %v1664 = vld [vmem:[%s1616 + $0xb8] sm:$0xff]
                %1665 = vst [vmem:[%s1617 + $0x138] sm:$0xff] %v1664
                %v1666 = vld [vmem:[%s1616 + $0xc0] sm:$0xff]
                %1667 = vst [vmem:[%s1617 + $0x140] sm:$0xff] %v1666
                %v1668 = vld [vmem:[%s1616 + $0xc8] sm:$0xff]
                %1669 = vst [vmem:[%s1617 + $0x148] sm:$0xff] %v1668
                %v1670 = vld [vmem:[%s1616 + $0xd0] sm:$0xff]
                %1671 = vst [vmem:[%s1617 + $0x150] sm:$0xff] %v1670
                %v1672 = vld [vmem:[%s1616 + $0xd8] sm:$0xff]
                %1673 = vst [vmem:[%s1617 + $0x158] sm:$0xff] %v1672
                %v1674 = vld [vmem:[%s1616 + $0xe0] sm:$0xff]
                %1675 = vst [vmem:[%s1617 + $0x160] sm:$0xff] %v1674
                %v1676 = vld [vmem:[%s1616 + $0xe8] sm:$0xff]
                %1677 = vst [vmem:[%s1617 + $0x168] sm:$0xff] %v1676
                %v1678 = vld [vmem:[%s1616 + $0xf0] sm:$0xff]
                %1679 = vst [vmem:[%s1617 + $0x170] sm:$0xff] %v1678
                %v1680 = vld [vmem:[%s1616 + $0xf8] sm:$0xff]
                %1681 = vst [vmem:[%s1617 + $0x178] sm:$0xff] %v1680
              $region199: #{tpu_custom_call.1} parent=193 // loop_footer
                %s1615 = sadd.s32 1, %s1611
              $region200: #{tpu_custom_call.1} parent=193 // loop_footer_branch
                %1610 = sbr.rel target = $region196
              $region201: #{tpu_custom_call.1} parent=193 // loop_exit
                _
            $region194: #{tpu_custom_call.1} parent=185 // pred_fallthru
              _
          $region186: #{tpu_custom_call.1} parent=181 // pred_fallthru
            _
          %1758 = vnop
        $region182: #{tpu_custom_call.1} parent=133 // pred_fallthru
          _
      $region134: #{tpu_custom_call.1} parent=5 // pred_fallthru
        _
      %p1759 = scmp.le.s32.totalorder 2, %s9
      // Predicated region
      $region217: #{tpu_custom_call.1} parent=5 // pred_check
        %p1760 = pneg %p1759
      $region218: #{tpu_custom_call.1} parent=5 // pred_check_branch
        %1762 = sbr.rel (%p1760) target = $region220
      $region219: #{tpu_custom_call.1} parent=5 // pred_region
        %s1763 = ssub.s32 %s9, 2
        // Predicated region
        $region221: #{tpu_custom_call.1} parent=219 // pred_check
          %p1764 = pneg %p161
        $region222: #{tpu_custom_call.1} parent=219 // pred_check_branch
          %1766 = sbr.rel (%p1764) target = $region224
        $region223: #{tpu_custom_call.1} parent=219 // pred_region
          %s1767 = sand.u32 %s146, 1
          %s1768 = sand.u32 %s146, 1
          %s1769 = smul.addr %s1768, 256
          %s1770 = scalar_lea.vmem [#allocation8], %s1769
        $region224: #{tpu_custom_call.1} parent=219 // pred_fallthru
          _
      $region220: #{tpu_custom_call.1} parent=5 // pred_fallthru
        _
    $region6: #{tpu_custom_call.1} parent=1 // loop_footer
      %s13 = sadd.s32 1, %s9
    $region7: #{tpu_custom_call.1} parent=1 // loop_footer_branch
      %8 = sbr.rel target = $region3
    $region8: #{tpu_custom_call.1} parent=1 // loop_exit
      _

</llo_original>
